<compile_context>
chip_gen: v5e
topology: v5e:2x2
jax: 0.10.0
libtpu: 0.0.40
codegen_flags: <defaults>
</compile_context>

<pallas_src>
import functools

import jax
import jax.numpy as jnp
from jax.experimental import pallas as pl
from jax.experimental.pallas import tpu as pltpu


def _ceil_to(x, m):
    return -(-x // m) * m


def _padded_rows(rows, itemsize):
    """Rows after sublane padding (8 sublanes x 32-bit packing)."""
    sub = 8 * max(1, 4 // itemsize)
    return _ceil_to(rows, sub)


def _pick_inner(tile, upsq):
    """Pick (lane_chunk, u_chunk) so the live f32 accumulators stay ~<=16 vregs."""
    budget = 64 * 1024                       # 3 * uc * lane_chunk * 4 bytes
    for lc in (1024, 512, 256, 128):
        if lc > tile:
            continue
        if 3 * upsq * lc * 4 <= budget:       # single u-chunk preferred
            return lc, upsq
    lc = min(tile, 256)
    for uc in range(min(upsq, 8), 0, -1):
        if upsq % uc == 0 and 3 * uc * lc * 4 <= budget:
            return lc, uc
    return min(tile, 128), 1


def _duf_kernel(ga_ref, gb_ref, f_ref, o_ref, *, kh, kw, w, pw, upsq, tile,
                lane_chunk, uc):
    """One (batch, hw-tile) grid step.

    ga_ref: (3, tile)          flat zero-padded input, tile t
    gb_ref: (3, tile)          flat zero-padded input, tile t+1 (halo)
    f_ref:  (kh*kw*upsq, tile) dynamic filters for this tile (collapsed minor)
    o_ref:  (3*upsq, tile)     output tile (rows ordered c*upsq + u)
    """
    n_uchunks = upsq // uc
    o0 = pl.program_id(1) * tile              # flat index of lane 0 of this tile

    def window(start, length):
        """(3, length) static-offset window of the flat padded input, assembled
        from the (ga | gb) block pair (start + length <= 2*tile by construction)."""
        if start + length <= tile:
            return ga_ref[:, start:start + length]
        if start >= tile:
            return gb_ref[:, start - tile:start - tile + length]
        n0 = tile - start
        return jnp.concatenate(
            [ga_ref[:, start:], gb_ref[:, :length - n0]], axis=-1)

    for off in range(0, tile, lane_chunk):
        lc = min(lane_chunk, tile - off)
        if pw > 0:
            # true image column of every flat output pixel in this lane chunk
            col = (o0 + off
                   + jax.lax.broadcasted_iota(jnp.int32, (3, lc), 1)) % w

        for ci in range(n_uchunks):
            u0 = ci * uc
            accs = [jnp.zeros((uc, lc), jnp.float32) for _ in range(3)]

            for dx in range(kw):
                # Column-wrap mask: hoisted out of the dy loop (one per dx).
                lo, hi = pw - dx, w + pw - dx
                need_mask = pw > 0 and (lo > 0 or hi < w)
                if need_mask:
                    if lo <= 0:
                        m = col < hi
                    elif hi >= w:
                        m = col >= lo
                    else:
                        m = (col >= lo) & (col < hi)

                for dy in range(kh):
                    p = window(off + dy * w + dx, lc)            # (3, lc)
                    if need_mask:
                        p = jnp.where(m, p, jnp.zeros_like(p))
                    p = p.astype(jnp.float32)
                    r0 = (dy * kw + dx) * upsq + u0
                    fk = f_ref[r0:r0 + uc, off:off + lc].astype(jnp.float32)
                    for c in range(3):
                        accs[c] = accs[c] + p[c:c + 1, :] * fk

            if n_uchunks == 1:
                blk = jnp.concatenate(accs, axis=0)              # (3*upsq, lc)
                o_ref[:, off:off + lc] = blk.astype(o_ref.dtype)
            else:
                for c in range(3):
                    r = c * upsq + u0
                    o_ref[r:r + uc, off:off + lc] = accs[c].astype(o_ref.dtype)


def dynamic_upsampling_filter(x, filters, filter_size=(5, 5),
                              compute_dtype=None):
    """Pallas TPU implementation of DynamicUpsamplingFilter.forward."""
    n, c, h, w = x.shape
    if c != 3:
        raise ValueError("DynamicUpsamplingFilter only supports 3-channel input")
    kh, kw = filter_size
    nf, fp, upsq, hf, wf = filters.shape
    assert nf == n and fp == kh * kw and (hf, wf) == (h, w)
    out_dtype = x.dtype

    if compute_dtype is not None:    # e.g. bf16: halves the dominant HBM stream
        x = x.astype(compute_dtype)
        filters = filters.astype(compute_dtype)

    ph, pw = kh // 2, kw // 2
    hw = h * w
    halo = (kh - 1) * w + (kw - 1)   # largest flat tap shift

    # hw tile: lane-dense multiple of 128, >= halo (gb provides the halo),
    # capped for vreg/compile friendliness; the ragged last tile is handled by
    # Pallas block clipping so the filter tensor is never padded.
    t_min = max(128, _ceil_to(halo, 128))
    tile = max(t_min, min(2048, _ceil_to(hw, 128)))
    num_tiles = -(-hw // tile)
    lane_chunk, uc = _pick_inner(tile, upsq)

    # Flat zero-padded input G with G[front + j] = x_flat[j]; tap (dy,dx) of
    # output pixel j reads G[j + dy*w + dx] (column wrap masked in-kernel).
    front = ph * w + pw
    total = (num_tiles + 1) * tile          # gb block (index t+1) stays in-bounds
    back = total - hw - front
    assert tile >= halo and back >= 0       # halo/padding coupling (explicit)
    g = jnp.pad(x.reshape(n, 3, hw), ((0, 0), (0, 0), (front, back)))

    # Collapse the (fp, upsq) minor pair -> lane-dense (fp*upsq, hw) stream.
    f_flat = filters.reshape(n, fp * upsq, hw)

    # VMEM footprint of all double-buffered blocks incl. sublane padding.
    fi = jnp.dtype(filters.dtype).itemsize
    gi = jnp.dtype(g.dtype).itemsize
    oi = jnp.dtype(out_dtype).itemsize
    footprint = (_padded_rows(fp * upsq, fi) * tile * fi * 2
                 + _padded_rows(3 * upsq, oi) * tile * oi * 2
                 + _padded_rows(3, gi) * tile * gi * 2 * 2)
    vmem_limit = int(min(48 * 2**20,
                         max(32 * 2**20, footprint + footprint // 4 + 4 * 2**20)))

    kernel = functools.partial(_duf_kernel, kh=kh, kw=kw, w=w, pw=pw,
                               upsq=upsq, tile=tile, lane_chunk=lane_chunk,
                               uc=uc)

    out = pl.pallas_call(
        kernel,
        out_shape=jax.ShapeDtypeStruct((n, 3 * upsq, hw), out_dtype),
        grid_spec=pltpu.PrefetchScalarGridSpec(
            num_scalar_prefetch=0,
            grid=(n, num_tiles),
            in_specs=[
                pl.BlockSpec((None, 3, tile), lambda b, t: (b, 0, t)),
                pl.BlockSpec((None, 3, tile), lambda b, t: (b, 0, t + 1)),
                pl.BlockSpec((None, fp * upsq, tile), lambda b, t: (b, 0, t)),
            ],
            out_specs=pl.BlockSpec((None, 3 * upsq, tile),
                                   lambda b, t: (b, 0, t)),
        ),
        compiler_params=pltpu.CompilerParams(
            dimension_semantics=("parallel", "parallel"),
            vmem_limit_bytes=vmem_limit),
    )(g, g, f_flat)

    # (n, 3*upsq, hw) -> (n, 3*upsq, h, w): pure view, matches the PyTorch .view()
    return out.reshape(n, 3 * upsq, h, w)


def _reference(x, filters, filter_size=(5, 5)):
    """Pure-JAX reference (exact f32 elementwise MAC)."""
    kh, kw = filter_size
    n, _, h, w = x.shape
    upsq = filters.shape[2]
    ph, pw = kh // 2, kw // 2
    xp = jnp.pad(x, ((0, 0), (0, 0), (ph, ph), (pw, pw)))
    patches = jnp.stack(
        [xp[:, :, dy:dy + h, dx:dx + w] for dy in range(kh) for dx in range(kw)],
        axis=2).astype(jnp.float32)                     # (n, 3, fp, h, w)
    f32 = filters.astype(jnp.float32)                   # (n, fp, upsq, h, w)
    out = (patches[:, :, :, None] * f32[:, None]).sum(axis=2)   # (n,3,upsq,h,w)
    return out.reshape(n, 3 * upsq, h, w)


if __name__ == "__main__":
    key = jax.random.PRNGKey(0)
    k1, k2, k3, k4 = jax.random.split(key, 4)
    filter_size = (5, 5)
    fp = filter_size[0] * filter_size[1]      # 25
    upsq = 4                                  # 2x upsampling -> 2*2

    # --- main case: n=2, 16x16 (hw divides the tile exactly) ----------------
    n, h, w = 2, 16, 16
    x = jax.random.normal(k1, (n, 3, h, w), dtype=jnp.float32)
    filters = jax.random.normal(k2, (n, fp, upsq, h, w), dtype=jnp.float32)

    duf_f32 = jax.jit(lambda a, f: dynamic_upsampling_filter(a, f, filter_size))
    out = jax.block_until_ready(duf_f32(x, filters))
    ref = _reference(x, filters, filter_size)
    assert out.shape == (n, 3 * upsq, h, w), out.shape
    err = float(jnp.max(jnp.abs(out - ref)))
    assert err < 1e-4, err

    # --- bf16 filter-stream path (recommended on v6e/v7x) -------------------
    duf_bf16 = jax.jit(lambda a, f: dynamic_upsampling_filter(
        a, f, filter_size, compute_dtype=jnp.bfloat16))
    out_bf = jax.block_until_ready(duf_bf16(x, filters))
    ref_bf = _reference(x.astype(jnp.bfloat16).astype(jnp.float32),
                        filters.astype(jnp.bfloat16).astype(jnp.float32),
                        filter_size)
    err_bf = float(jnp.max(jnp.abs(out_bf - ref_bf)))
    assert err_bf < 1e-3, err_bf

    # --- ragged case: h*w not a multiple of 128 (no filter padding) ---------
    h2, w2 = 10, 24
    x2 = jax.random.normal(k3, (1, 3, h2, w2), dtype=jnp.float32)
    f2 = jax.random.normal(k4, (1, fp, upsq, h2, w2), dtype=jnp.float32)
    out2 = jax.block_until_ready(
        jax.jit(lambda a, f: dynamic_upsampling_filter(a, f, filter_size))(x2, f2))
    ref2 = _reference(x2, f2, filter_size)
    err2 = float(jnp.max(jnp.abs(out2 - ref2)))
    assert err2 < 1e-4, err2

    print("KERNEL_OK")
</pallas_src>

<mosaic_0001>
module attributes {stable_mosaic.version = 11 : i64} {
  func.func @_duf_kernel(%arg0: i32, %arg1: i32, %arg2: memref<1x3x256xf32, #tpu.memory_space<vmem>>, %arg3: memref<1x3x256xf32, #tpu.memory_space<vmem>>, %arg4: memref<1x100x256xf32, #tpu.memory_space<vmem>>, %arg5: memref<1x12x256xf32, #tpu.memory_space<vmem>>) attributes {dimension_semantics = [#tpu.dimension_semantics<parallel>, #tpu.dimension_semantics<parallel>], iteration_bounds = array<i64: 2, 1>, scalar_prefetch = 0 : i64, scratch_operands = 0 : i64, tpu.core_type = #tpu.core_type<tc>, window_params = [{transform_indices = @transform_0, window_bounds = array<i64: 1, 3, 256>}, {transform_indices = @transform_1, window_bounds = array<i64: 1, 3, 256>}, {transform_indices = @transform_2, window_bounds = array<i64: 1, 100, 256>}, {transform_indices = @transform_3, window_bounds = array<i64: 1, 12, 256>}]} {
    %c256_i32 = arith.constant 256 : i32
    %0 = arith.muli %arg1, %c256_i32 : i32
    %c0_i32 = arith.constant 0 : i32
    %1 = arith.addi %0, %c0_i32 : i32
    %2 = tpu.iota {dimensions = array<i32: 1>} : vector<3x256xi32>
    %3 = vector.broadcast %1 : i32 to vector<3x256xi32>
    %4 = arith.addi %3, %2 : vector<3x256xi32>
    %c16_i32 = arith.constant 16 : i32
    %c0_i32_0 = arith.constant 0 : i32
    %5 = arith.cmpi eq, %c16_i32, %c0_i32_0 : i32
    %c1_i32 = arith.constant 1 : i32
    %6 = arith.select %5, %c1_i32, %c16_i32 : i32
    %7 = vector.broadcast %6 : i32 to vector<3x256xi32>
    %8 = arith.remsi %4, %7 : vector<3x256xi32>
    %c0_i32_1 = arith.constant 0 : i32
    %9 = vector.broadcast %c0_i32_1 : i32 to vector<3x256xi32>
    %10 = arith.cmpi ne, %8, %9 : vector<3x256xi32>
    %c0_i32_2 = arith.constant 0 : i32
    %11 = vector.broadcast %c0_i32_2 : i32 to vector<3x256xi32>
    %12 = arith.cmpi slt, %8, %11 : vector<3x256xi32>
    %c0_i32_3 = arith.constant 0 : i32
    %13 = arith.cmpi slt, %6, %c0_i32_3 : i32
    %14 = vector.broadcast %13 : i1 to vector<3x256xi1>
    %15 = vector.broadcast %14 : vector<3x256xi1> to vector<3x256xi1>
    %16 = arith.xori %12, %15 : vector<3x256xi1>
    %17 = arith.andi %16, %10 : vector<3x256xi1>
    %18 = vector.broadcast %6 : i32 to vector<3x256xi32>
    %19 = arith.addi %8, %18 : vector<3x256xi32>
    %20 = arith.select %17, %19, %8 : vector<3x256xi1>, vector<3x256xi32>
    %cst = arith.constant 0.000000e+00 : f32
    %21 = vector.broadcast %cst : f32 to vector<4x256xf32>
    %cst_4 = arith.constant 0.000000e+00 : f32
    %22 = vector.broadcast %cst_4 : f32 to vector<4x256xf32>
    %cst_5 = arith.constant 0.000000e+00 : f32
    %23 = vector.broadcast %cst_5 : f32 to vector<4x256xf32>
    %c2_i32 = arith.constant 2 : i32
    %24 = vector.broadcast %c2_i32 : i32 to vector<3x256xi32>
    %25 = arith.cmpi sge, %20, %24 : vector<3x256xi32>
    %c0 = arith.constant 0 : index
    %c0_6 = arith.constant 0 : index
    %c0_7 = arith.constant 0 : index
    %26 = vector.load %arg2[%c0, %c0_6, %c0_7] : memref<1x3x256xf32, #tpu.memory_space<vmem>>, vector<1x3x256xf32>
    %27 = vector.shape_cast %26 : vector<1x3x256xf32> to vector<3x256xf32>
    %cst_8 = arith.constant 0.000000e+00 : f32
    %28 = vector.broadcast %cst_8 : f32 to vector<3x256xf32>
    %29 = arith.select %25, %27, %28 : vector<3x256xi1>, vector<3x256xf32>
    %c0_9 = arith.constant 0 : index
    %c0_10 = arith.constant 0 : index
    %c0_11 = arith.constant 0 : index
    %30 = vector.load %arg4[%c0_9, %c0_10, %c0_11] : memref<1x100x256xf32, #tpu.memory_space<vmem>>, vector<1x4x256xf32>
    %31 = vector.shape_cast %30 : vector<1x4x256xf32> to vector<4x256xf32>
    %32 = vector.extract_strided_slice %29 {offsets = [0, 0], sizes = [1, 256], strides = [1, 1]} : vector<3x256xf32> to vector<1x256xf32>
    %33 = vector.broadcast %32 : vector<1x256xf32> to vector<4x256xf32>
    %34 = arith.mulf %33, %31 : vector<4x256xf32>
    %35 = arith.addf %21, %34 : vector<4x256xf32>
    %36 = vector.extract_strided_slice %29 {offsets = [1, 0], sizes = [1, 256], strides = [1, 1]} : vector<3x256xf32> to vector<1x256xf32>
    %37 = vector.broadcast %36 : vector<1x256xf32> to vector<4x256xf32>
    %38 = arith.mulf %37, %31 : vector<4x256xf32>
    %39 = arith.addf %22, %38 : vector<4x256xf32>
    %40 = vector.extract_strided_slice %29 {offsets = [2, 0], sizes = [1, 256], strides = [1, 1]} : vector<3x256xf32> to vector<1x256xf32>
    %41 = vector.broadcast %40 : vector<1x256xf32> to vector<4x256xf32>
    %42 = arith.mulf %41, %31 : vector<4x256xf32>
    %43 = arith.addf %23, %42 : vector<4x256xf32>
    %c0_12 = arith.constant 0 : index
    %c0_13 = arith.constant 0 : index
    %c16 = arith.constant 16 : index
    %44 = vector.load %arg2[%c0_12, %c0_13, %c16] : memref<1x3x256xf32, #tpu.memory_space<vmem>>, vector<1x3x240xf32>
    %45 = vector.shape_cast %44 : vector<1x3x240xf32> to vector<3x240xf32>
    %c0_14 = arith.constant 0 : index
    %c0_15 = arith.constant 0 : index
    %c0_16 = arith.constant 0 : index
    %46 = vector.load %arg3[%c0_14, %c0_15, %c0_16] : memref<1x3x256xf32, #tpu.memory_space<vmem>>, vector<1x3x16xf32>
    %47 = vector.shape_cast %46 : vector<1x3x16xf32> to vector<3x16xf32>
    %48 = tpu.concatenate %45, %47 in 1 : vector<3x240xf32>, vector<3x16xf32> -> vector<3x256xf32>
    %cst_17 = arith.constant 0.000000e+00 : f32
    %49 = vector.broadcast %cst_17 : f32 to vector<3x256xf32>
    %50 = arith.select %25, %48, %49 : vector<3x256xi1>, vector<3x256xf32>
    %c0_18 = arith.constant 0 : index
    %c20 = arith.constant 20 : index
    %c0_19 = arith.constant 0 : index
    %51 = vector.load %arg4[%c0_18, %c20, %c0_19] : memref<1x100x256xf32, #tpu.memory_space<vmem>>, vector<1x4x256xf32>
    %52 = vector.shape_cast %51 : vector<1x4x256xf32> to vector<4x256xf32>
    %53 = vector.extract_strided_slice %50 {offsets = [0, 0], sizes = [1, 256], strides = [1, 1]} : vector<3x256xf32> to vector<1x256xf32>
    %54 = vector.broadcast %53 : vector<1x256xf32> to vector<4x256xf32>
    %55 = arith.mulf %54, %52 : vector<4x256xf32>
    %56 = arith.addf %35, %55 : vector<4x256xf32>
    %57 = vector.extract_strided_slice %50 {offsets = [1, 0], sizes = [1, 256], strides = [1, 1]} : vector<3x256xf32> to vector<1x256xf32>
    %58 = vector.broadcast %57 : vector<1x256xf32> to vector<4x256xf32>
    %59 = arith.mulf %58, %52 : vector<4x256xf32>
    %60 = arith.addf %39, %59 : vector<4x256xf32>
    %61 = vector.extract_strided_slice %50 {offsets = [2, 0], sizes = [1, 256], strides = [1, 1]} : vector<3x256xf32> to vector<1x256xf32>
    %62 = vector.broadcast %61 : vector<1x256xf32> to vector<4x256xf32>
    %63 = arith.mulf %62, %52 : vector<4x256xf32>
    %64 = arith.addf %43, %63 : vector<4x256xf32>
    %c0_20 = arith.constant 0 : index
    %c0_21 = arith.constant 0 : index
    %c32 = arith.constant 32 : index
    %65 = vector.load %arg2[%c0_20, %c0_21, %c32] : memref<1x3x256xf32, #tpu.memory_space<vmem>>, vector<1x3x224xf32>
    %66 = vector.shape_cast %65 : vector<1x3x224xf32> to vector<3x224xf32>
    %c0_22 = arith.constant 0 : index
    %c0_23 = arith.constant 0 : index
    %c0_24 = arith.constant 0 : index
    %67 = vector.load %arg3[%c0_22, %c0_23, %c0_24] : memref<1x3x256xf32, #tpu.memory_space<vmem>>, vector<1x3x32xf32>
    %68 = vector.shape_cast %67 : vector<1x3x32xf32> to vector<3x32xf32>
    %69 = tpu.concatenate %66, %68 in 1 : vector<3x224xf32>, vector<3x32xf32> -> vector<3x256xf32>
    %cst_25 = arith.constant 0.000000e+00 : f32
    %70 = vector.broadcast %cst_25 : f32 to vector<3x256xf32>
    %71 = arith.select %25, %69, %70 : vector<3x256xi1>, vector<3x256xf32>
    %c0_26 = arith.constant 0 : index
    %c40 = arith.constant 40 : index
    %c0_27 = arith.constant 0 : index
    %72 = vector.load %arg4[%c0_26, %c40, %c0_27] : memref<1x100x256xf32, #tpu.memory_space<vmem>>, vector<1x4x256xf32>
    %73 = vector.shape_cast %72 : vector<1x4x256xf32> to vector<4x256xf32>
    %74 = vector.extract_strided_slice %71 {offsets = [0, 0], sizes = [1, 256], strides = [1, 1]} : vector<3x256xf32> to vector<1x256xf32>
    %75 = vector.broadcast %74 : vector<1x256xf32> to vector<4x256xf32>
    %76 = arith.mulf %75, %73 : vector<4x256xf32>
    %77 = arith.addf %56, %76 : vector<4x256xf32>
    %78 = vector.extract_strided_slice %71 {offsets = [1, 0], sizes = [1, 256], strides = [1, 1]} : vector<3x256xf32> to vector<1x256xf32>
    %79 = vector.broadcast %78 : vector<1x256xf32> to vector<4x256xf32>
    %80 = arith.mulf %79, %73 : vector<4x256xf32>
    %81 = arith.addf %60, %80 : vector<4x256xf32>
    %82 = vector.extract_strided_slice %71 {offsets = [2, 0], sizes = [1, 256], strides = [1, 1]} : vector<3x256xf32> to vector<1x256xf32>
    %83 = vector.broadcast %82 : vector<1x256xf32> to vector<4x256xf32>
    %84 = arith.mulf %83, %73 : vector<4x256xf32>
    %85 = arith.addf %64, %84 : vector<4x256xf32>
    %c0_28 = arith.constant 0 : index
    %c0_29 = arith.constant 0 : index
    %c48 = arith.constant 48 : index
    %86 = vector.load %arg2[%c0_28, %c0_29, %c48] : memref<1x3x256xf32, #tpu.memory_space<vmem>>, vector<1x3x208xf32>
    %87 = vector.shape_cast %86 : vector<1x3x208xf32> to vector<3x208xf32>
    %c0_30 = arith.constant 0 : index
    %c0_31 = arith.constant 0 : index
    %c0_32 = arith.constant 0 : index
    %88 = vector.load %arg3[%c0_30, %c0_31, %c0_32] : memref<1x3x256xf32, #tpu.memory_space<vmem>>, vector<1x3x48xf32>
    %89 = vector.shape_cast %88 : vector<1x3x48xf32> to vector<3x48xf32>
    %90 = tpu.concatenate %87, %89 in 1 : vector<3x208xf32>, vector<3x48xf32> -> vector<3x256xf32>
    %cst_33 = arith.constant 0.000000e+00 : f32
    %91 = vector.broadcast %cst_33 : f32 to vector<3x256xf32>
    %92 = arith.select %25, %90, %91 : vector<3x256xi1>, vector<3x256xf32>
    %c0_34 = arith.constant 0 : index
    %c60 = arith.constant 60 : index
    %c0_35 = arith.constant 0 : index
    %93 = vector.load %arg4[%c0_34, %c60, %c0_35] : memref<1x100x256xf32, #tpu.memory_space<vmem>>, vector<1x4x256xf32>
    %94 = vector.shape_cast %93 : vector<1x4x256xf32> to vector<4x256xf32>
    %95 = vector.extract_strided_slice %92 {offsets = [0, 0], sizes = [1, 256], strides = [1, 1]} : vector<3x256xf32> to vector<1x256xf32>
    %96 = vector.broadcast %95 : vector<1x256xf32> to vector<4x256xf32>
    %97 = arith.mulf %96, %94 : vector<4x256xf32>
    %98 = arith.addf %77, %97 : vector<4x256xf32>
    %99 = vector.extract_strided_slice %92 {offsets = [1, 0], sizes = [1, 256], strides = [1, 1]} : vector<3x256xf32> to vector<1x256xf32>
    %100 = vector.broadcast %99 : vector<1x256xf32> to vector<4x256xf32>
    %101 = arith.mulf %100, %94 : vector<4x256xf32>
    %102 = arith.addf %81, %101 : vector<4x256xf32>
    %103 = vector.extract_strided_slice %92 {offsets = [2, 0], sizes = [1, 256], strides = [1, 1]} : vector<3x256xf32> to vector<1x256xf32>
    %104 = vector.broadcast %103 : vector<1x256xf32> to vector<4x256xf32>
    %105 = arith.mulf %104, %94 : vector<4x256xf32>
    %106 = arith.addf %85, %105 : vector<4x256xf32>
    %c0_36 = arith.constant 0 : index
    %c0_37 = arith.constant 0 : index
    %c64 = arith.constant 64 : index
    %107 = vector.load %arg2[%c0_36, %c0_37, %c64] : memref<1x3x256xf32, #tpu.memory_space<vmem>>, vector<1x3x192xf32>
    %108 = vector.shape_cast %107 : vector<1x3x192xf32> to vector<3x192xf32>
    %c0_38 = arith.constant 0 : index
    %c0_39 = arith.constant 0 : index
    %c0_40 = arith.constant 0 : index
    %109 = vector.load %arg3[%c0_38, %c0_39, %c0_40] : memref<1x3x256xf32, #tpu.memory_space<vmem>>, vector<1x3x64xf32>
    %110 = vector.shape_cast %109 : vector<1x3x64xf32> to vector<3x64xf32>
    %111 = tpu.concatenate %108, %110 in 1 : vector<3x192xf32>, vector<3x64xf32> -> vector<3x256xf32>
    %cst_41 = arith.constant 0.000000e+00 : f32
    %112 = vector.broadcast %cst_41 : f32 to vector<3x256xf32>
    %113 = arith.select %25, %111, %112 : vector<3x256xi1>, vector<3x256xf32>
    %c0_42 = arith.constant 0 : index
    %c80 = arith.constant 80 : index
    %c0_43 = arith.constant 0 : index
    %114 = vector.load %arg4[%c0_42, %c80, %c0_43] : memref<1x100x256xf32, #tpu.memory_space<vmem>>, vector<1x4x256xf32>
    %115 = vector.shape_cast %114 : vector<1x4x256xf32> to vector<4x256xf32>
    %116 = vector.extract_strided_slice %113 {offsets = [0, 0], sizes = [1, 256], strides = [1, 1]} : vector<3x256xf32> to vector<1x256xf32>
    %117 = vector.broadcast %116 : vector<1x256xf32> to vector<4x256xf32>
    %118 = arith.mulf %117, %115 : vector<4x256xf32>
    %119 = arith.addf %98, %118 : vector<4x256xf32>
    %120 = vector.extract_strided_slice %113 {offsets = [1, 0], sizes = [1, 256], strides = [1, 1]} : vector<3x256xf32> to vector<1x256xf32>
    %121 = vector.broadcast %120 : vector<1x256xf32> to vector<4x256xf32>
    %122 = arith.mulf %121, %115 : vector<4x256xf32>
    %123 = arith.addf %102, %122 : vector<4x256xf32>
    %124 = vector.extract_strided_slice %113 {offsets = [2, 0], sizes = [1, 256], strides = [1, 1]} : vector<3x256xf32> to vector<1x256xf32>
    %125 = vector.broadcast %124 : vector<1x256xf32> to vector<4x256xf32>
    %126 = arith.mulf %125, %115 : vector<4x256xf32>
    %127 = arith.addf %106, %126 : vector<4x256xf32>
    %c1_i32_44 = arith.constant 1 : i32
    %128 = vector.broadcast %c1_i32_44 : i32 to vector<3x256xi32>
    %129 = arith.cmpi sge, %20, %128 : vector<3x256xi32>
    %c0_45 = arith.constant 0 : index
    %c0_46 = arith.constant 0 : index
    %c1 = arith.constant 1 : index
    %130 = vector.load %arg2[%c0_45, %c0_46, %c1] : memref<1x3x256xf32, #tpu.memory_space<vmem>>, vector<1x3x255xf32>
    %131 = vector.shape_cast %130 : vector<1x3x255xf32> to vector<3x255xf32>
    %c0_47 = arith.constant 0 : index
    %c0_48 = arith.constant 0 : index
    %c0_49 = arith.constant 0 : index
    %132 = vector.load %arg3[%c0_47, %c0_48, %c0_49] : memref<1x3x256xf32, #tpu.memory_space<vmem>>, vector<1x3x1xf32>
    %133 = vector.shape_cast %132 : vector<1x3x1xf32> to vector<3x1xf32>
    %134 = tpu.concatenate %131, %133 in 1 : vector<3x255xf32>, vector<3x1xf32> -> vector<3x256xf32>
    %cst_50 = arith.constant 0.000000e+00 : f32
    %135 = vector.broadcast %cst_50 : f32 to vector<3x256xf32>
    %136 = arith.select %129, %134, %135 : vector<3x256xi1>, vector<3x256xf32>
    %c0_51 = arith.constant 0 : index
    %c4 = arith.constant 4 : index
    %c0_52 = arith.constant 0 : index
    %137 = vector.load %arg4[%c0_51, %c4, %c0_52] : memref<1x100x256xf32, #tpu.memory_space<vmem>>, vector<1x4x256xf32>
    %138 = vector.shape_cast %137 : vector<1x4x256xf32> to vector<4x256xf32>
    %139 = vector.extract_strided_slice %136 {offsets = [0, 0], sizes = [1, 256], strides = [1, 1]} : vector<3x256xf32> to vector<1x256xf32>
    %140 = vector.broadcast %139 : vector<1x256xf32> to vector<4x256xf32>
    %141 = arith.mulf %140, %138 : vector<4x256xf32>
    %142 = arith.addf %119, %141 : vector<4x256xf32>
    %143 = vector.extract_strided_slice %136 {offsets = [1, 0], sizes = [1, 256], strides = [1, 1]} : vector<3x256xf32> to vector<1x256xf32>
    %144 = vector.broadcast %143 : vector<1x256xf32> to vector<4x256xf32>
    %145 = arith.mulf %144, %138 : vector<4x256xf32>
    %146 = arith.addf %123, %145 : vector<4x256xf32>
    %147 = vector.extract_strided_slice %136 {offsets = [2, 0], sizes = [1, 256], strides = [1, 1]} : vector<3x256xf32> to vector<1x256xf32>
    %148 = vector.broadcast %147 : vector<1x256xf32> to vector<4x256xf32>
    %149 = arith.mulf %148, %138 : vector<4x256xf32>
    %150 = arith.addf %127, %149 : vector<4x256xf32>
    %c0_53 = arith.constant 0 : index
    %c0_54 = arith.constant 0 : index
    %c17 = arith.constant 17 : index
    %151 = vector.load %arg2[%c0_53, %c0_54, %c17] : memref<1x3x256xf32, #tpu.memory_space<vmem>>, vector<1x3x239xf32>
    %152 = vector.shape_cast %151 : vector<1x3x239xf32> to vector<3x239xf32>
    %c0_55 = arith.constant 0 : index
    %c0_56 = arith.constant 0 : index
    %c0_57 = arith.constant 0 : index
    %153 = vector.load %arg3[%c0_55, %c0_56, %c0_57] : memref<1x3x256xf32, #tpu.memory_space<vmem>>, vector<1x3x17xf32>
    %154 = vector.shape_cast %153 : vector<1x3x17xf32> to vector<3x17xf32>
    %155 = tpu.concatenate %152, %154 in 1 : vector<3x239xf32>, vector<3x17xf32> -> vector<3x256xf32>
    %cst_58 = arith.constant 0.000000e+00 : f32
    %156 = vector.broadcast %cst_58 : f32 to vector<3x256xf32>
    %157 = arith.select %129, %155, %156 : vector<3x256xi1>, vector<3x256xf32>
    %c0_59 = arith.constant 0 : index
    %c24 = arith.constant 24 : index
    %c0_60 = arith.constant 0 : index
    %158 = vector.load %arg4[%c0_59, %c24, %c0_60] : memref<1x100x256xf32, #tpu.memory_space<vmem>>, vector<1x4x256xf32>
    %159 = vector.shape_cast %158 : vector<1x4x256xf32> to vector<4x256xf32>
    %160 = vector.extract_strided_slice %157 {offsets = [0, 0], sizes = [1, 256], strides = [1, 1]} : vector<3x256xf32> to vector<1x256xf32>
    %161 = vector.broadcast %160 : vector<1x256xf32> to vector<4x256xf32>
    %162 = arith.mulf %161, %159 : vector<4x256xf32>
    %163 = arith.addf %142, %162 : vector<4x256xf32>
    %164 = vector.extract_strided_slice %157 {offsets = [1, 0], sizes = [1, 256], strides = [1, 1]} : vector<3x256xf32> to vector<1x256xf32>
    %165 = vector.broadcast %164 : vector<1x256xf32> to vector<4x256xf32>
    %166 = arith.mulf %165, %159 : vector<4x256xf32>
    %167 = arith.addf %146, %166 : vector<4x256xf32>
    %168 = vector.extract_strided_slice %157 {offsets = [2, 0], sizes = [1, 256], strides = [1, 1]} : vector<3x256xf32> to vector<1x256xf32>
    %169 = vector.broadcast %168 : vector<1x256xf32> to vector<4x256xf32>
    %170 = arith.mulf %169, %159 : vector<4x256xf32>
    %171 = arith.addf %150, %170 : vector<4x256xf32>
    %c0_61 = arith.constant 0 : index
    %c0_62 = arith.constant 0 : index
    %c33 = arith.constant 33 : index
    %172 = vector.load %arg2[%c0_61, %c0_62, %c33] : memref<1x3x256xf32, #tpu.memory_space<vmem>>, vector<1x3x223xf32>
    %173 = vector.shape_cast %172 : vector<1x3x223xf32> to vector<3x223xf32>
    %c0_63 = arith.constant 0 : index
    %c0_64 = arith.constant 0 : index
    %c0_65 = arith.constant 0 : index
    %174 = vector.load %arg3[%c0_63, %c0_64, %c0_65] : memref<1x3x256xf32, #tpu.memory_space<vmem>>, vector<1x3x33xf32>
    %175 = vector.shape_cast %174 : vector<1x3x33xf32> to vector<3x33xf32>
    %176 = tpu.concatenate %173, %175 in 1 : vector<3x223xf32>, vector<3x33xf32> -> vector<3x256xf32>
    %cst_66 = arith.constant 0.000000e+00 : f32
    %177 = vector.broadcast %cst_66 : f32 to vector<3x256xf32>
    %178 = arith.select %129, %176, %177 : vector<3x256xi1>, vector<3x256xf32>
    %c0_67 = arith.constant 0 : index
    %c44 = arith.constant 44 : index
    %c0_68 = arith.constant 0 : index
    %179 = vector.load %arg4[%c0_67, %c44, %c0_68] : memref<1x100x256xf32, #tpu.memory_space<vmem>>, vector<1x4x256xf32>
    %180 = vector.shape_cast %179 : vector<1x4x256xf32> to vector<4x256xf32>
    %181 = vector.extract_strided_slice %178 {offsets = [0, 0], sizes = [1, 256], strides = [1, 1]} : vector<3x256xf32> to vector<1x256xf32>
    %182 = vector.broadcast %181 : vector<1x256xf32> to vector<4x256xf32>
    %183 = arith.mulf %182, %180 : vector<4x256xf32>
    %184 = arith.addf %163, %183 : vector<4x256xf32>
    %185 = vector.extract_strided_slice %178 {offsets = [1, 0], sizes = [1, 256], strides = [1, 1]} : vector<3x256xf32> to vector<1x256xf32>
    %186 = vector.broadcast %185 : vector<1x256xf32> to vector<4x256xf32>
    %187 = arith.mulf %186, %180 : vector<4x256xf32>
    %188 = arith.addf %167, %187 : vector<4x256xf32>
    %189 = vector.extract_strided_slice %178 {offsets = [2, 0], sizes = [1, 256], strides = [1, 1]} : vector<3x256xf32> to vector<1x256xf32>
    %190 = vector.broadcast %189 : vector<1x256xf32> to vector<4x256xf32>
    %191 = arith.mulf %190, %180 : vector<4x256xf32>
    %192 = arith.addf %171, %191 : vector<4x256xf32>
    %c0_69 = arith.constant 0 : index
    %c0_70 = arith.constant 0 : index
    %c49 = arith.constant 49 : index
    %193 = vector.load %arg2[%c0_69, %c0_70, %c49] : memref<1x3x256xf32, #tpu.memory_space<vmem>>, vector<1x3x207xf32>
    %194 = vector.shape_cast %193 : vector<1x3x207xf32> to vector<3x207xf32>
    %c0_71 = arith.constant 0 : index
    %c0_72 = arith.constant 0 : index
    %c0_73 = arith.constant 0 : index
    %195 = vector.load %arg3[%c0_71, %c0_72, %c0_73] : memref<1x3x256xf32, #tpu.memory_space<vmem>>, vector<1x3x49xf32>
    %196 = vector.shape_cast %195 : vector<1x3x49xf32> to vector<3x49xf32>
    %197 = tpu.concatenate %194, %196 in 1 : vector<3x207xf32>, vector<3x49xf32> -> vector<3x256xf32>
    %cst_74 = arith.constant 0.000000e+00 : f32
    %198 = vector.broadcast %cst_74 : f32 to vector<3x256xf32>
    %199 = arith.select %129, %197, %198 : vector<3x256xi1>, vector<3x256xf32>
    %c0_75 = arith.constant 0 : index
    %c64_76 = arith.constant 64 : index
    %c0_77 = arith.constant 0 : index
    %200 = vector.load %arg4[%c0_75, %c64_76, %c0_77] : memref<1x100x256xf32, #tpu.memory_space<vmem>>, vector<1x4x256xf32>
    %201 = vector.shape_cast %200 : vector<1x4x256xf32> to vector<4x256xf32>
    %202 = vector.extract_strided_slice %199 {offsets = [0, 0], sizes = [1, 256], strides = [1, 1]} : vector<3x256xf32> to vector<1x256xf32>
    %203 = vector.broadcast %202 : vector<1x256xf32> to vector<4x256xf32>
    %204 = arith.mulf %203, %201 : vector<4x256xf32>
    %205 = arith.addf %184, %204 : vector<4x256xf32>
    %206 = vector.extract_strided_slice %199 {offsets = [1, 0], sizes = [1, 256], strides = [1, 1]} : vector<3x256xf32> to vector<1x256xf32>
    %207 = vector.broadcast %206 : vector<1x256xf32> to vector<4x256xf32>
    %208 = arith.mulf %207, %201 : vector<4x256xf32>
    %209 = arith.addf %188, %208 : vector<4x256xf32>
    %210 = vector.extract_strided_slice %199 {offsets = [2, 0], sizes = [1, 256], strides = [1, 1]} : vector<3x256xf32> to vector<1x256xf32>
    %211 = vector.broadcast %210 : vector<1x256xf32> to vector<4x256xf32>
    %212 = arith.mulf %211, %201 : vector<4x256xf32>
    %213 = arith.addf %192, %212 : vector<4x256xf32>
    %c0_78 = arith.constant 0 : index
    %c0_79 = arith.constant 0 : index
    %c65 = arith.constant 65 : index
    %214 = vector.load %arg2[%c0_78, %c0_79, %c65] : memref<1x3x256xf32, #tpu.memory_space<vmem>>, vector<1x3x191xf32>
    %215 = vector.shape_cast %214 : vector<1x3x191xf32> to vector<3x191xf32>
    %c0_80 = arith.constant 0 : index
    %c0_81 = arith.constant 0 : index
    %c0_82 = arith.constant 0 : index
    %216 = vector.load %arg3[%c0_80, %c0_81, %c0_82] : memref<1x3x256xf32, #tpu.memory_space<vmem>>, vector<1x3x65xf32>
    %217 = vector.shape_cast %216 : vector<1x3x65xf32> to vector<3x65xf32>
    %218 = tpu.concatenate %215, %217 in 1 : vector<3x191xf32>, vector<3x65xf32> -> vector<3x256xf32>
    %cst_83 = arith.constant 0.000000e+00 : f32
    %219 = vector.broadcast %cst_83 : f32 to vector<3x256xf32>
    %220 = arith.select %129, %218, %219 : vector<3x256xi1>, vector<3x256xf32>
    %c0_84 = arith.constant 0 : index
    %c84 = arith.constant 84 : index
    %c0_85 = arith.constant 0 : index
    %221 = vector.load %arg4[%c0_84, %c84, %c0_85] : memref<1x100x256xf32, #tpu.memory_space<vmem>>, vector<1x4x256xf32>
    %222 = vector.shape_cast %221 : vector<1x4x256xf32> to vector<4x256xf32>
    %223 = vector.extract_strided_slice %220 {offsets = [0, 0], sizes = [1, 256], strides = [1, 1]} : vector<3x256xf32> to vector<1x256xf32>
    %224 = vector.broadcast %223 : vector<1x256xf32> to vector<4x256xf32>
    %225 = arith.mulf %224, %222 : vector<4x256xf32>
    %226 = arith.addf %205, %225 : vector<4x256xf32>
    %227 = vector.extract_strided_slice %220 {offsets = [1, 0], sizes = [1, 256], strides = [1, 1]} : vector<3x256xf32> to vector<1x256xf32>
    %228 = vector.broadcast %227 : vector<1x256xf32> to vector<4x256xf32>
    %229 = arith.mulf %228, %222 : vector<4x256xf32>
    %230 = arith.addf %209, %229 : vector<4x256xf32>
    %231 = vector.extract_strided_slice %220 {offsets = [2, 0], sizes = [1, 256], strides = [1, 1]} : vector<3x256xf32> to vector<1x256xf32>
    %232 = vector.broadcast %231 : vector<1x256xf32> to vector<4x256xf32>
    %233 = arith.mulf %232, %222 : vector<4x256xf32>
    %234 = arith.addf %213, %233 : vector<4x256xf32>
    %c0_86 = arith.constant 0 : index
    %c0_87 = arith.constant 0 : index
    %c2 = arith.constant 2 : index
    %235 = vector.load %arg2[%c0_86, %c0_87, %c2] : memref<1x3x256xf32, #tpu.memory_space<vmem>>, vector<1x3x254xf32>
    %236 = vector.shape_cast %235 : vector<1x3x254xf32> to vector<3x254xf32>
    %c0_88 = arith.constant 0 : index
    %c0_89 = arith.constant 0 : index
    %c0_90 = arith.constant 0 : index
    %237 = vector.load %arg3[%c0_88, %c0_89, %c0_90] : memref<1x3x256xf32, #tpu.memory_space<vmem>>, vector<1x3x2xf32>
    %238 = vector.shape_cast %237 : vector<1x3x2xf32> to vector<3x2xf32>
    %239 = tpu.concatenate %236, %238 in 1 : vector<3x254xf32>, vector<3x2xf32> -> vector<3x256xf32>
    %c0_91 = arith.constant 0 : index
    %c8 = arith.constant 8 : index
    %c0_92 = arith.constant 0 : index
    %240 = vector.load %arg4[%c0_91, %c8, %c0_92] : memref<1x100x256xf32, #tpu.memory_space<vmem>>, vector<1x4x256xf32>
    %241 = vector.shape_cast %240 : vector<1x4x256xf32> to vector<4x256xf32>
    %242 = vector.extract_strided_slice %239 {offsets = [0, 0], sizes = [1, 256], strides = [1, 1]} : vector<3x256xf32> to vector<1x256xf32>
    %243 = vector.broadcast %242 : vector<1x256xf32> to vector<4x256xf32>
    %244 = arith.mulf %243, %241 : vector<4x256xf32>
    %245 = arith.addf %226, %244 : vector<4x256xf32>
    %246 = vector.extract_strided_slice %239 {offsets = [1, 0], sizes = [1, 256], strides = [1, 1]} : vector<3x256xf32> to vector<1x256xf32>
    %247 = vector.broadcast %246 : vector<1x256xf32> to vector<4x256xf32>
    %248 = arith.mulf %247, %241 : vector<4x256xf32>
    %249 = arith.addf %230, %248 : vector<4x256xf32>
    %250 = vector.extract_strided_slice %239 {offsets = [2, 0], sizes = [1, 256], strides = [1, 1]} : vector<3x256xf32> to vector<1x256xf32>
    %251 = vector.broadcast %250 : vector<1x256xf32> to vector<4x256xf32>
    %252 = arith.mulf %251, %241 : vector<4x256xf32>
    %253 = arith.addf %234, %252 : vector<4x256xf32>
    %c0_93 = arith.constant 0 : index
    %c0_94 = arith.constant 0 : index
    %c18 = arith.constant 18 : index
    %254 = vector.load %arg2[%c0_93, %c0_94, %c18] : memref<1x3x256xf32, #tpu.memory_space<vmem>>, vector<1x3x238xf32>
    %255 = vector.shape_cast %254 : vector<1x3x238xf32> to vector<3x238xf32>
    %c0_95 = arith.constant 0 : index
    %c0_96 = arith.constant 0 : index
    %c0_97 = arith.constant 0 : index
    %256 = vector.load %arg3[%c0_95, %c0_96, %c0_97] : memref<1x3x256xf32, #tpu.memory_space<vmem>>, vector<1x3x18xf32>
    %257 = vector.shape_cast %256 : vector<1x3x18xf32> to vector<3x18xf32>
    %258 = tpu.concatenate %255, %257 in 1 : vector<3x238xf32>, vector<3x18xf32> -> vector<3x256xf32>
    %c0_98 = arith.constant 0 : index
    %c28 = arith.constant 28 : index
    %c0_99 = arith.constant 0 : index
    %259 = vector.load %arg4[%c0_98, %c28, %c0_99] : memref<1x100x256xf32, #tpu.memory_space<vmem>>, vector<1x4x256xf32>
    %260 = vector.shape_cast %259 : vector<1x4x256xf32> to vector<4x256xf32>
    %261 = vector.extract_strided_slice %258 {offsets = [0, 0], sizes = [1, 256], strides = [1, 1]} : vector<3x256xf32> to vector<1x256xf32>
    %262 = vector.broadcast %261 : vector<1x256xf32> to vector<4x256xf32>
    %263 = arith.mulf %262, %260 : vector<4x256xf32>
    %264 = arith.addf %245, %263 : vector<4x256xf32>
    %265 = vector.extract_strided_slice %258 {offsets = [1, 0], sizes = [1, 256], strides = [1, 1]} : vector<3x256xf32> to vector<1x256xf32>
    %266 = vector.broadcast %265 : vector<1x256xf32> to vector<4x256xf32>
    %267 = arith.mulf %266, %260 : vector<4x256xf32>
    %268 = arith.addf %249, %267 : vector<4x256xf32>
    %269 = vector.extract_strided_slice %258 {offsets = [2, 0], sizes = [1, 256], strides = [1, 1]} : vector<3x256xf32> to vector<1x256xf32>
    %270 = vector.broadcast %269 : vector<1x256xf32> to vector<4x256xf32>
    %271 = arith.mulf %270, %260 : vector<4x256xf32>
    %272 = arith.addf %253, %271 : vector<4x256xf32>
    %c0_100 = arith.constant 0 : index
    %c0_101 = arith.constant 0 : index
    %c34 = arith.constant 34 : index
    %273 = vector.load %arg2[%c0_100, %c0_101, %c34] : memref<1x3x256xf32, #tpu.memory_space<vmem>>, vector<1x3x222xf32>
    %274 = vector.shape_cast %273 : vector<1x3x222xf32> to vector<3x222xf32>
    %c0_102 = arith.constant 0 : index
    %c0_103 = arith.constant 0 : index
    %c0_104 = arith.constant 0 : index
    %275 = vector.load %arg3[%c0_102, %c0_103, %c0_104] : memref<1x3x256xf32, #tpu.memory_space<vmem>>, vector<1x3x34xf32>
    %276 = vector.shape_cast %275 : vector<1x3x34xf32> to vector<3x34xf32>
    %277 = tpu.concatenate %274, %276 in 1 : vector<3x222xf32>, vector<3x34xf32> -> vector<3x256xf32>
    %c0_105 = arith.constant 0 : index
    %c48_106 = arith.constant 48 : index
    %c0_107 = arith.constant 0 : index
    %278 = vector.load %arg4[%c0_105, %c48_106, %c0_107] : memref<1x100x256xf32, #tpu.memory_space<vmem>>, vector<1x4x256xf32>
    %279 = vector.shape_cast %278 : vector<1x4x256xf32> to vector<4x256xf32>
    %280 = vector.extract_strided_slice %277 {offsets = [0, 0], sizes = [1, 256], strides = [1, 1]} : vector<3x256xf32> to vector<1x256xf32>
    %281 = vector.broadcast %280 : vector<1x256xf32> to vector<4x256xf32>
    %282 = arith.mulf %281, %279 : vector<4x256xf32>
    %283 = arith.addf %264, %282 : vector<4x256xf32>
    %284 = vector.extract_strided_slice %277 {offsets = [1, 0], sizes = [1, 256], strides = [1, 1]} : vector<3x256xf32> to vector<1x256xf32>
    %285 = vector.broadcast %284 : vector<1x256xf32> to vector<4x256xf32>
    %286 = arith.mulf %285, %279 : vector<4x256xf32>
    %287 = arith.addf %268, %286 : vector<4x256xf32>
    %288 = vector.extract_strided_slice %277 {offsets = [2, 0], sizes = [1, 256], strides = [1, 1]} : vector<3x256xf32> to vector<1x256xf32>
    %289 = vector.broadcast %288 : vector<1x256xf32> to vector<4x256xf32>
    %290 = arith.mulf %289, %279 : vector<4x256xf32>
    %291 = arith.addf %272, %290 : vector<4x256xf32>
    %c0_108 = arith.constant 0 : index
    %c0_109 = arith.constant 0 : index
    %c50 = arith.constant 50 : index
    %292 = vector.load %arg2[%c0_108, %c0_109, %c50] : memref<1x3x256xf32, #tpu.memory_space<vmem>>, vector<1x3x206xf32>
    %293 = vector.shape_cast %292 : vector<1x3x206xf32> to vector<3x206xf32>
    %c0_110 = arith.constant 0 : index
    %c0_111 = arith.constant 0 : index
    %c0_112 = arith.constant 0 : index
    %294 = vector.load %arg3[%c0_110, %c0_111, %c0_112] : memref<1x3x256xf32, #tpu.memory_space<vmem>>, vector<1x3x50xf32>
    %295 = vector.shape_cast %294 : vector<1x3x50xf32> to vector<3x50xf32>
    %296 = tpu.concatenate %293, %295 in 1 : vector<3x206xf32>, vector<3x50xf32> -> vector<3x256xf32>
    %c0_113 = arith.constant 0 : index
    %c68 = arith.constant 68 : index
    %c0_114 = arith.constant 0 : index
    %297 = vector.load %arg4[%c0_113, %c68, %c0_114] : memref<1x100x256xf32, #tpu.memory_space<vmem>>, vector<1x4x256xf32>
    %298 = vector.shape_cast %297 : vector<1x4x256xf32> to vector<4x256xf32>
    %299 = vector.extract_strided_slice %296 {offsets = [0, 0], sizes = [1, 256], strides = [1, 1]} : vector<3x256xf32> to vector<1x256xf32>
    %300 = vector.broadcast %299 : vector<1x256xf32> to vector<4x256xf32>
    %301 = arith.mulf %300, %298 : vector<4x256xf32>
    %302 = arith.addf %283, %301 : vector<4x256xf32>
    %303 = vector.extract_strided_slice %296 {offsets = [1, 0], sizes = [1, 256], strides = [1, 1]} : vector<3x256xf32> to vector<1x256xf32>
    %304 = vector.broadcast %303 : vector<1x256xf32> to vector<4x256xf32>
    %305 = arith.mulf %304, %298 : vector<4x256xf32>
    %306 = arith.addf %287, %305 : vector<4x256xf32>
    %307 = vector.extract_strided_slice %296 {offsets = [2, 0], sizes = [1, 256], strides = [1, 1]} : vector<3x256xf32> to vector<1x256xf32>
    %308 = vector.broadcast %307 : vector<1x256xf32> to vector<4x256xf32>
    %309 = arith.mulf %308, %298 : vector<4x256xf32>
    %310 = arith.addf %291, %309 : vector<4x256xf32>
    %c0_115 = arith.constant 0 : index
    %c0_116 = arith.constant 0 : index
    %c66 = arith.constant 66 : index
    %311 = vector.load %arg2[%c0_115, %c0_116, %c66] : memref<1x3x256xf32, #tpu.memory_space<vmem>>, vector<1x3x190xf32>
    %312 = vector.shape_cast %311 : vector<1x3x190xf32> to vector<3x190xf32>
    %c0_117 = arith.constant 0 : index
    %c0_118 = arith.constant 0 : index
    %c0_119 = arith.constant 0 : index
    %313 = vector.load %arg3[%c0_117, %c0_118, %c0_119] : memref<1x3x256xf32, #tpu.memory_space<vmem>>, vector<1x3x66xf32>
    %314 = vector.shape_cast %313 : vector<1x3x66xf32> to vector<3x66xf32>
    %315 = tpu.concatenate %312, %314 in 1 : vector<3x190xf32>, vector<3x66xf32> -> vector<3x256xf32>
    %c0_120 = arith.constant 0 : index
    %c88 = arith.constant 88 : index
    %c0_121 = arith.constant 0 : index
    %316 = vector.load %arg4[%c0_120, %c88, %c0_121] : memref<1x100x256xf32, #tpu.memory_space<vmem>>, vector<1x4x256xf32>
    %317 = vector.shape_cast %316 : vector<1x4x256xf32> to vector<4x256xf32>
    %318 = vector.extract_strided_slice %315 {offsets = [0, 0], sizes = [1, 256], strides = [1, 1]} : vector<3x256xf32> to vector<1x256xf32>
    %319 = vector.broadcast %318 : vector<1x256xf32> to vector<4x256xf32>
    %320 = arith.mulf %319, %317 : vector<4x256xf32>
    %321 = arith.addf %302, %320 : vector<4x256xf32>
    %322 = vector.extract_strided_slice %315 {offsets = [1, 0], sizes = [1, 256], strides = [1, 1]} : vector<3x256xf32> to vector<1x256xf32>
    %323 = vector.broadcast %322 : vector<1x256xf32> to vector<4x256xf32>
    %324 = arith.mulf %323, %317 : vector<4x256xf32>
    %325 = arith.addf %306, %324 : vector<4x256xf32>
    %326 = vector.extract_strided_slice %315 {offsets = [2, 0], sizes = [1, 256], strides = [1, 1]} : vector<3x256xf32> to vector<1x256xf32>
    %327 = vector.broadcast %326 : vector<1x256xf32> to vector<4x256xf32>
    %328 = arith.mulf %327, %317 : vector<4x256xf32>
    %329 = arith.addf %310, %328 : vector<4x256xf32>
    %c15_i32 = arith.constant 15 : i32
    %330 = vector.broadcast %c15_i32 : i32 to vector<3x256xi32>
    %331 = arith.cmpi slt, %20, %330 : vector<3x256xi32>
    %c0_122 = arith.constant 0 : index
    %c0_123 = arith.constant 0 : index
    %c3 = arith.constant 3 : index
    %332 = vector.load %arg2[%c0_122, %c0_123, %c3] : memref<1x3x256xf32, #tpu.memory_space<vmem>>, vector<1x3x253xf32>
    %333 = vector.shape_cast %332 : vector<1x3x253xf32> to vector<3x253xf32>
    %c0_124 = arith.constant 0 : index
    %c0_125 = arith.constant 0 : index
    %c0_126 = arith.constant 0 : index
    %334 = vector.load %arg3[%c0_124, %c0_125, %c0_126] : memref<1x3x256xf32, #tpu.memory_space<vmem>>, vector<1x3x3xf32>
    %335 = vector.shape_cast %334 : vector<1x3x3xf32> to vector<3x3xf32>
    %336 = tpu.concatenate %333, %335 in 1 : vector<3x253xf32>, vector<3x3xf32> -> vector<3x256xf32>
    %cst_127 = arith.constant 0.000000e+00 : f32
    %337 = vector.broadcast %cst_127 : f32 to vector<3x256xf32>
    %338 = arith.select %331, %336, %337 : vector<3x256xi1>, vector<3x256xf32>
    %c0_128 = arith.constant 0 : index
    %c12 = arith.constant 12 : index
    %c0_129 = arith.constant 0 : index
    %339 = vector.load %arg4[%c0_128, %c12, %c0_129] : memref<1x100x256xf32, #tpu.memory_space<vmem>>, vector<1x4x256xf32>
    %340 = vector.shape_cast %339 : vector<1x4x256xf32> to vector<4x256xf32>
    %341 = vector.extract_strided_slice %338 {offsets = [0, 0], sizes = [1, 256], strides = [1, 1]} : vector<3x256xf32> to vector<1x256xf32>
    %342 = vector.broadcast %341 : vector<1x256xf32> to vector<4x256xf32>
    %343 = arith.mulf %342, %340 : vector<4x256xf32>
    %344 = arith.addf %321, %343 : vector<4x256xf32>
    %345 = vector.extract_strided_slice %338 {offsets = [1, 0], sizes = [1, 256], strides = [1, 1]} : vector<3x256xf32> to vector<1x256xf32>
    %346 = vector.broadcast %345 : vector<1x256xf32> to vector<4x256xf32>
    %347 = arith.mulf %346, %340 : vector<4x256xf32>
    %348 = arith.addf %325, %347 : vector<4x256xf32>
    %349 = vector.extract_strided_slice %338 {offsets = [2, 0], sizes = [1, 256], strides = [1, 1]} : vector<3x256xf32> to vector<1x256xf32>
    %350 = vector.broadcast %349 : vector<1x256xf32> to vector<4x256xf32>
    %351 = arith.mulf %350, %340 : vector<4x256xf32>
    %352 = arith.addf %329, %351 : vector<4x256xf32>
    %c0_130 = arith.constant 0 : index
    %c0_131 = arith.constant 0 : index
    %c19 = arith.constant 19 : index
    %353 = vector.load %arg2[%c0_130, %c0_131, %c19] : memref<1x3x256xf32, #tpu.memory_space<vmem>>, vector<1x3x237xf32>
    %354 = vector.shape_cast %353 : vector<1x3x237xf32> to vector<3x237xf32>
    %c0_132 = arith.constant 0 : index
    %c0_133 = arith.constant 0 : index
    %c0_134 = arith.constant 0 : index
    %355 = vector.load %arg3[%c0_132, %c0_133, %c0_134] : memref<1x3x256xf32, #tpu.memory_space<vmem>>, vector<1x3x19xf32>
    %356 = vector.shape_cast %355 : vector<1x3x19xf32> to vector<3x19xf32>
    %357 = tpu.concatenate %354, %356 in 1 : vector<3x237xf32>, vector<3x19xf32> -> vector<3x256xf32>
    %cst_135 = arith.constant 0.000000e+00 : f32
    %358 = vector.broadcast %cst_135 : f32 to vector<3x256xf32>
    %359 = arith.select %331, %357, %358 : vector<3x256xi1>, vector<3x256xf32>
    %c0_136 = arith.constant 0 : index
    %c32_137 = arith.constant 32 : index
    %c0_138 = arith.constant 0 : index
    %360 = vector.load %arg4[%c0_136, %c32_137, %c0_138] : memref<1x100x256xf32, #tpu.memory_space<vmem>>, vector<1x4x256xf32>
    %361 = vector.shape_cast %360 : vector<1x4x256xf32> to vector<4x256xf32>
    %362 = vector.extract_strided_slice %359 {offsets = [0, 0], sizes = [1, 256], strides = [1, 1]} : vector<3x256xf32> to vector<1x256xf32>
    %363 = vector.broadcast %362 : vector<1x256xf32> to vector<4x256xf32>
    %364 = arith.mulf %363, %361 : vector<4x256xf32>
    %365 = arith.addf %344, %364 : vector<4x256xf32>
    %366 = vector.extract_strided_slice %359 {offsets = [1, 0], sizes = [1, 256], strides = [1, 1]} : vector<3x256xf32> to vector<1x256xf32>
    %367 = vector.broadcast %366 : vector<1x256xf32> to vector<4x256xf32>
    %368 = arith.mulf %367, %361 : vector<4x256xf32>
    %369 = arith.addf %348, %368 : vector<4x256xf32>
    %370 = vector.extract_strided_slice %359 {offsets = [2, 0], sizes = [1, 256], strides = [1, 1]} : vector<3x256xf32> to vector<1x256xf32>
    %371 = vector.broadcast %370 : vector<1x256xf32> to vector<4x256xf32>
    %372 = arith.mulf %371, %361 : vector<4x256xf32>
    %373 = arith.addf %352, %372 : vector<4x256xf32>
    %c0_139 = arith.constant 0 : index
    %c0_140 = arith.constant 0 : index
    %c35 = arith.constant 35 : index
    %374 = vector.load %arg2[%c0_139, %c0_140, %c35] : memref<1x3x256xf32, #tpu.memory_space<vmem>>, vector<1x3x221xf32>
    %375 = vector.shape_cast %374 : vector<1x3x221xf32> to vector<3x221xf32>
    %c0_141 = arith.constant 0 : index
    %c0_142 = arith.constant 0 : index
    %c0_143 = arith.constant 0 : index
    %376 = vector.load %arg3[%c0_141, %c0_142, %c0_143] : memref<1x3x256xf32, #tpu.memory_space<vmem>>, vector<1x3x35xf32>
    %377 = vector.shape_cast %376 : vector<1x3x35xf32> to vector<3x35xf32>
    %378 = tpu.concatenate %375, %377 in 1 : vector<3x221xf32>, vector<3x35xf32> -> vector<3x256xf32>
    %cst_144 = arith.constant 0.000000e+00 : f32
    %379 = vector.broadcast %cst_144 : f32 to vector<3x256xf32>
    %380 = arith.select %331, %378, %379 : vector<3x256xi1>, vector<3x256xf32>
    %c0_145 = arith.constant 0 : index
    %c52 = arith.constant 52 : index
    %c0_146 = arith.constant 0 : index
    %381 = vector.load %arg4[%c0_145, %c52, %c0_146] : memref<1x100x256xf32, #tpu.memory_space<vmem>>, vector<1x4x256xf32>
    %382 = vector.shape_cast %381 : vector<1x4x256xf32> to vector<4x256xf32>
    %383 = vector.extract_strided_slice %380 {offsets = [0, 0], sizes = [1, 256], strides = [1, 1]} : vector<3x256xf32> to vector<1x256xf32>
    %384 = vector.broadcast %383 : vector<1x256xf32> to vector<4x256xf32>
    %385 = arith.mulf %384, %382 : vector<4x256xf32>
    %386 = arith.addf %365, %385 : vector<4x256xf32>
    %387 = vector.extract_strided_slice %380 {offsets = [1, 0], sizes = [1, 256], strides = [1, 1]} : vector<3x256xf32> to vector<1x256xf32>
    %388 = vector.broadcast %387 : vector<1x256xf32> to vector<4x256xf32>
    %389 = arith.mulf %388, %382 : vector<4x256xf32>
    %390 = arith.addf %369, %389 : vector<4x256xf32>
    %391 = vector.extract_strided_slice %380 {offsets = [2, 0], sizes = [1, 256], strides = [1, 1]} : vector<3x256xf32> to vector<1x256xf32>
    %392 = vector.broadcast %391 : vector<1x256xf32> to vector<4x256xf32>
    %393 = arith.mulf %392, %382 : vector<4x256xf32>
    %394 = arith.addf %373, %393 : vector<4x256xf32>
    %c0_147 = arith.constant 0 : index
    %c0_148 = arith.constant 0 : index
    %c51 = arith.constant 51 : index
    %395 = vector.load %arg2[%c0_147, %c0_148, %c51] : memref<1x3x256xf32, #tpu.memory_space<vmem>>, vector<1x3x205xf32>
    %396 = vector.shape_cast %395 : vector<1x3x205xf32> to vector<3x205xf32>
    %c0_149 = arith.constant 0 : index
    %c0_150 = arith.constant 0 : index
    %c0_151 = arith.constant 0 : index
    %397 = vector.load %arg3[%c0_149, %c0_150, %c0_151] : memref<1x3x256xf32, #tpu.memory_space<vmem>>, vector<1x3x51xf32>
    %398 = vector.shape_cast %397 : vector<1x3x51xf32> to vector<3x51xf32>
    %399 = tpu.concatenate %396, %398 in 1 : vector<3x205xf32>, vector<3x51xf32> -> vector<3x256xf32>
    %cst_152 = arith.constant 0.000000e+00 : f32
    %400 = vector.broadcast %cst_152 : f32 to vector<3x256xf32>
    %401 = arith.select %331, %399, %400 : vector<3x256xi1>, vector<3x256xf32>
    %c0_153 = arith.constant 0 : index
    %c72 = arith.constant 72 : index
    %c0_154 = arith.constant 0 : index
    %402 = vector.load %arg4[%c0_153, %c72, %c0_154] : memref<1x100x256xf32, #tpu.memory_space<vmem>>, vector<1x4x256xf32>
    %403 = vector.shape_cast %402 : vector<1x4x256xf32> to vector<4x256xf32>
    %404 = vector.extract_strided_slice %401 {offsets = [0, 0], sizes = [1, 256], strides = [1, 1]} : vector<3x256xf32> to vector<1x256xf32>
    %405 = vector.broadcast %404 : vector<1x256xf32> to vector<4x256xf32>
    %406 = arith.mulf %405, %403 : vector<4x256xf32>
    %407 = arith.addf %386, %406 : vector<4x256xf32>
    %408 = vector.extract_strided_slice %401 {offsets = [1, 0], sizes = [1, 256], strides = [1, 1]} : vector<3x256xf32> to vector<1x256xf32>
    %409 = vector.broadcast %408 : vector<1x256xf32> to vector<4x256xf32>
    %410 = arith.mulf %409, %403 : vector<4x256xf32>
    %411 = arith.addf %390, %410 : vector<4x256xf32>
    %412 = vector.extract_strided_slice %401 {offsets = [2, 0], sizes = [1, 256], strides = [1, 1]} : vector<3x256xf32> to vector<1x256xf32>
    %413 = vector.broadcast %412 : vector<1x256xf32> to vector<4x256xf32>
    %414 = arith.mulf %413, %403 : vector<4x256xf32>
    %415 = arith.addf %394, %414 : vector<4x256xf32>
    %c0_155 = arith.constant 0 : index
    %c0_156 = arith.constant 0 : index
    %c67 = arith.constant 67 : index
    %416 = vector.load %arg2[%c0_155, %c0_156, %c67] : memref<1x3x256xf32, #tpu.memory_space<vmem>>, vector<1x3x189xf32>
    %417 = vector.shape_cast %416 : vector<1x3x189xf32> to vector<3x189xf32>
    %c0_157 = arith.constant 0 : index
    %c0_158 = arith.constant 0 : index
    %c0_159 = arith.constant 0 : index
    %418 = vector.load %arg3[%c0_157, %c0_158, %c0_159] : memref<1x3x256xf32, #tpu.memory_space<vmem>>, vector<1x3x67xf32>
    %419 = vector.shape_cast %418 : vector<1x3x67xf32> to vector<3x67xf32>
    %420 = tpu.concatenate %417, %419 in 1 : vector<3x189xf32>, vector<3x67xf32> -> vector<3x256xf32>
    %cst_160 = arith.constant 0.000000e+00 : f32
    %421 = vector.broadcast %cst_160 : f32 to vector<3x256xf32>
    %422 = arith.select %331, %420, %421 : vector<3x256xi1>, vector<3x256xf32>
    %c0_161 = arith.constant 0 : index
    %c92 = arith.constant 92 : index
    %c0_162 = arith.constant 0 : index
    %423 = vector.load %arg4[%c0_161, %c92, %c0_162] : memref<1x100x256xf32, #tpu.memory_space<vmem>>, vector<1x4x256xf32>
    %424 = vector.shape_cast %423 : vector<1x4x256xf32> to vector<4x256xf32>
    %425 = vector.extract_strided_slice %422 {offsets = [0, 0], sizes = [1, 256], strides = [1, 1]} : vector<3x256xf32> to vector<1x256xf32>
    %426 = vector.broadcast %425 : vector<1x256xf32> to vector<4x256xf32>
    %427 = arith.mulf %426, %424 : vector<4x256xf32>
    %428 = arith.addf %407, %427 : vector<4x256xf32>
    %429 = vector.extract_strided_slice %422 {offsets = [1, 0], sizes = [1, 256], strides = [1, 1]} : vector<3x256xf32> to vector<1x256xf32>
    %430 = vector.broadcast %429 : vector<1x256xf32> to vector<4x256xf32>
    %431 = arith.mulf %430, %424 : vector<4x256xf32>
    %432 = arith.addf %411, %431 : vector<4x256xf32>
    %433 = vector.extract_strided_slice %422 {offsets = [2, 0], sizes = [1, 256], strides = [1, 1]} : vector<3x256xf32> to vector<1x256xf32>
    %434 = vector.broadcast %433 : vector<1x256xf32> to vector<4x256xf32>
    %435 = arith.mulf %434, %424 : vector<4x256xf32>
    %436 = arith.addf %415, %435 : vector<4x256xf32>
    %c14_i32 = arith.constant 14 : i32
    %437 = vector.broadcast %c14_i32 : i32 to vector<3x256xi32>
    %438 = arith.cmpi slt, %20, %437 : vector<3x256xi32>
    %c0_163 = arith.constant 0 : index
    %c0_164 = arith.constant 0 : index
    %c4_165 = arith.constant 4 : index
    %439 = vector.load %arg2[%c0_163, %c0_164, %c4_165] : memref<1x3x256xf32, #tpu.memory_space<vmem>>, vector<1x3x252xf32>
    %440 = vector.shape_cast %439 : vector<1x3x252xf32> to vector<3x252xf32>
    %c0_166 = arith.constant 0 : index
    %c0_167 = arith.constant 0 : index
    %c0_168 = arith.constant 0 : index
    %441 = vector.load %arg3[%c0_166, %c0_167, %c0_168] : memref<1x3x256xf32, #tpu.memory_space<vmem>>, vector<1x3x4xf32>
    %442 = vector.shape_cast %441 : vector<1x3x4xf32> to vector<3x4xf32>
    %443 = tpu.concatenate %440, %442 in 1 : vector<3x252xf32>, vector<3x4xf32> -> vector<3x256xf32>
    %cst_169 = arith.constant 0.000000e+00 : f32
    %444 = vector.broadcast %cst_169 : f32 to vector<3x256xf32>
    %445 = arith.select %438, %443, %444 : vector<3x256xi1>, vector<3x256xf32>
    %c0_170 = arith.constant 0 : index
    %c16_171 = arith.constant 16 : index
    %c0_172 = arith.constant 0 : index
    %446 = vector.load %arg4[%c0_170, %c16_171, %c0_172] : memref<1x100x256xf32, #tpu.memory_space<vmem>>, vector<1x4x256xf32>
    %447 = vector.shape_cast %446 : vector<1x4x256xf32> to vector<4x256xf32>
    %448 = vector.extract_strided_slice %445 {offsets = [0, 0], sizes = [1, 256], strides = [1, 1]} : vector<3x256xf32> to vector<1x256xf32>
    %449 = vector.broadcast %448 : vector<1x256xf32> to vector<4x256xf32>
    %450 = arith.mulf %449, %447 : vector<4x256xf32>
    %451 = arith.addf %428, %450 : vector<4x256xf32>
    %452 = vector.extract_strided_slice %445 {offsets = [1, 0], sizes = [1, 256], strides = [1, 1]} : vector<3x256xf32> to vector<1x256xf32>
    %453 = vector.broadcast %452 : vector<1x256xf32> to vector<4x256xf32>
    %454 = arith.mulf %453, %447 : vector<4x256xf32>
    %455 = arith.addf %432, %454 : vector<4x256xf32>
    %456 = vector.extract_strided_slice %445 {offsets = [2, 0], sizes = [1, 256], strides = [1, 1]} : vector<3x256xf32> to vector<1x256xf32>
    %457 = vector.broadcast %456 : vector<1x256xf32> to vector<4x256xf32>
    %458 = arith.mulf %457, %447 : vector<4x256xf32>
    %459 = arith.addf %436, %458 : vector<4x256xf32>
    %c0_173 = arith.constant 0 : index
    %c0_174 = arith.constant 0 : index
    %c20_175 = arith.constant 20 : index
    %460 = vector.load %arg2[%c0_173, %c0_174, %c20_175] : memref<1x3x256xf32, #tpu.memory_space<vmem>>, vector<1x3x236xf32>
    %461 = vector.shape_cast %460 : vector<1x3x236xf32> to vector<3x236xf32>
    %c0_176 = arith.constant 0 : index
    %c0_177 = arith.constant 0 : index
    %c0_178 = arith.constant 0 : index
    %462 = vector.load %arg3[%c0_176, %c0_177, %c0_178] : memref<1x3x256xf32, #tpu.memory_space<vmem>>, vector<1x3x20xf32>
    %463 = vector.shape_cast %462 : vector<1x3x20xf32> to vector<3x20xf32>
    %464 = tpu.concatenate %461, %463 in 1 : vector<3x236xf32>, vector<3x20xf32> -> vector<3x256xf32>
    %cst_179 = arith.constant 0.000000e+00 : f32
    %465 = vector.broadcast %cst_179 : f32 to vector<3x256xf32>
    %466 = arith.select %438, %464, %465 : vector<3x256xi1>, vector<3x256xf32>
    %c0_180 = arith.constant 0 : index
    %c36 = arith.constant 36 : index
    %c0_181 = arith.constant 0 : index
    %467 = vector.load %arg4[%c0_180, %c36, %c0_181] : memref<1x100x256xf32, #tpu.memory_space<vmem>>, vector<1x4x256xf32>
    %468 = vector.shape_cast %467 : vector<1x4x256xf32> to vector<4x256xf32>
    %469 = vector.extract_strided_slice %466 {offsets = [0, 0], sizes = [1, 256], strides = [1, 1]} : vector<3x256xf32> to vector<1x256xf32>
    %470 = vector.broadcast %469 : vector<1x256xf32> to vector<4x256xf32>
    %471 = arith.mulf %470, %468 : vector<4x256xf32>
    %472 = arith.addf %451, %471 : vector<4x256xf32>
    %473 = vector.extract_strided_slice %466 {offsets = [1, 0], sizes = [1, 256], strides = [1, 1]} : vector<3x256xf32> to vector<1x256xf32>
    %474 = vector.broadcast %473 : vector<1x256xf32> to vector<4x256xf32>
    %475 = arith.mulf %474, %468 : vector<4x256xf32>
    %476 = arith.addf %455, %475 : vector<4x256xf32>
    %477 = vector.extract_strided_slice %466 {offsets = [2, 0], sizes = [1, 256], strides = [1, 1]} : vector<3x256xf32> to vector<1x256xf32>
    %478 = vector.broadcast %477 : vector<1x256xf32> to vector<4x256xf32>
    %479 = arith.mulf %478, %468 : vector<4x256xf32>
    %480 = arith.addf %459, %479 : vector<4x256xf32>
    %c0_182 = arith.constant 0 : index
    %c0_183 = arith.constant 0 : index
    %c36_184 = arith.constant 36 : index
    %481 = vector.load %arg2[%c0_182, %c0_183, %c36_184] : memref<1x3x256xf32, #tpu.memory_space<vmem>>, vector<1x3x220xf32>
    %482 = vector.shape_cast %481 : vector<1x3x220xf32> to vector<3x220xf32>
    %c0_185 = arith.constant 0 : index
    %c0_186 = arith.constant 0 : index
    %c0_187 = arith.constant 0 : index
    %483 = vector.load %arg3[%c0_185, %c0_186, %c0_187] : memref<1x3x256xf32, #tpu.memory_space<vmem>>, vector<1x3x36xf32>
    %484 = vector.shape_cast %483 : vector<1x3x36xf32> to vector<3x36xf32>
    %485 = tpu.concatenate %482, %484 in 1 : vector<3x220xf32>, vector<3x36xf32> -> vector<3x256xf32>
    %cst_188 = arith.constant 0.000000e+00 : f32
    %486 = vector.broadcast %cst_188 : f32 to vector<3x256xf32>
    %487 = arith.select %438, %485, %486 : vector<3x256xi1>, vector<3x256xf32>
    %c0_189 = arith.constant 0 : index
    %c56 = arith.constant 56 : index
    %c0_190 = arith.constant 0 : index
    %488 = vector.load %arg4[%c0_189, %c56, %c0_190] : memref<1x100x256xf32, #tpu.memory_space<vmem>>, vector<1x4x256xf32>
    %489 = vector.shape_cast %488 : vector<1x4x256xf32> to vector<4x256xf32>
    %490 = vector.extract_strided_slice %487 {offsets = [0, 0], sizes = [1, 256], strides = [1, 1]} : vector<3x256xf32> to vector<1x256xf32>
    %491 = vector.broadcast %490 : vector<1x256xf32> to vector<4x256xf32>
    %492 = arith.mulf %491, %489 : vector<4x256xf32>
    %493 = arith.addf %472, %492 : vector<4x256xf32>
    %494 = vector.extract_strided_slice %487 {offsets = [1, 0], sizes = [1, 256], strides = [1, 1]} : vector<3x256xf32> to vector<1x256xf32>
    %495 = vector.broadcast %494 : vector<1x256xf32> to vector<4x256xf32>
    %496 = arith.mulf %495, %489 : vector<4x256xf32>
    %497 = arith.addf %476, %496 : vector<4x256xf32>
    %498 = vector.extract_strided_slice %487 {offsets = [2, 0], sizes = [1, 256], strides = [1, 1]} : vector<3x256xf32> to vector<1x256xf32>
    %499 = vector.broadcast %498 : vector<1x256xf32> to vector<4x256xf32>
    %500 = arith.mulf %499, %489 : vector<4x256xf32>
    %501 = arith.addf %480, %500 : vector<4x256xf32>
    %c0_191 = arith.constant 0 : index
    %c0_192 = arith.constant 0 : index
    %c52_193 = arith.constant 52 : index
    %502 = vector.load %arg2[%c0_191, %c0_192, %c52_193] : memref<1x3x256xf32, #tpu.memory_space<vmem>>, vector<1x3x204xf32>
    %503 = vector.shape_cast %502 : vector<1x3x204xf32> to vector<3x204xf32>
    %c0_194 = arith.constant 0 : index
    %c0_195 = arith.constant 0 : index
    %c0_196 = arith.constant 0 : index
    %504 = vector.load %arg3[%c0_194, %c0_195, %c0_196] : memref<1x3x256xf32, #tpu.memory_space<vmem>>, vector<1x3x52xf32>
    %505 = vector.shape_cast %504 : vector<1x3x52xf32> to vector<3x52xf32>
    %506 = tpu.concatenate %503, %505 in 1 : vector<3x204xf32>, vector<3x52xf32> -> vector<3x256xf32>
    %cst_197 = arith.constant 0.000000e+00 : f32
    %507 = vector.broadcast %cst_197 : f32 to vector<3x256xf32>
    %508 = arith.select %438, %506, %507 : vector<3x256xi1>, vector<3x256xf32>
    %c0_198 = arith.constant 0 : index
    %c76 = arith.constant 76 : index
    %c0_199 = arith.constant 0 : index
    %509 = vector.load %arg4[%c0_198, %c76, %c0_199] : memref<1x100x256xf32, #tpu.memory_space<vmem>>, vector<1x4x256xf32>
    %510 = vector.shape_cast %509 : vector<1x4x256xf32> to vector<4x256xf32>
    %511 = vector.extract_strided_slice %508 {offsets = [0, 0], sizes = [1, 256], strides = [1, 1]} : vector<3x256xf32> to vector<1x256xf32>
    %512 = vector.broadcast %511 : vector<1x256xf32> to vector<4x256xf32>
    %513 = arith.mulf %512, %510 : vector<4x256xf32>
    %514 = arith.addf %493, %513 : vector<4x256xf32>
    %515 = vector.extract_strided_slice %508 {offsets = [1, 0], sizes = [1, 256], strides = [1, 1]} : vector<3x256xf32> to vector<1x256xf32>
    %516 = vector.broadcast %515 : vector<1x256xf32> to vector<4x256xf32>
    %517 = arith.mulf %516, %510 : vector<4x256xf32>
    %518 = arith.addf %497, %517 : vector<4x256xf32>
    %519 = vector.extract_strided_slice %508 {offsets = [2, 0], sizes = [1, 256], strides = [1, 1]} : vector<3x256xf32> to vector<1x256xf32>
    %520 = vector.broadcast %519 : vector<1x256xf32> to vector<4x256xf32>
    %521 = arith.mulf %520, %510 : vector<4x256xf32>
    %522 = arith.addf %501, %521 : vector<4x256xf32>
    %c0_200 = arith.constant 0 : index
    %c0_201 = arith.constant 0 : index
    %c68_202 = arith.constant 68 : index
    %523 = vector.load %arg2[%c0_200, %c0_201, %c68_202] : memref<1x3x256xf32, #tpu.memory_space<vmem>>, vector<1x3x188xf32>
    %524 = vector.shape_cast %523 : vector<1x3x188xf32> to vector<3x188xf32>
    %c0_203 = arith.constant 0 : index
    %c0_204 = arith.constant 0 : index
    %c0_205 = arith.constant 0 : index
    %525 = vector.load %arg3[%c0_203, %c0_204, %c0_205] : memref<1x3x256xf32, #tpu.memory_space<vmem>>, vector<1x3x68xf32>
    %526 = vector.shape_cast %525 : vector<1x3x68xf32> to vector<3x68xf32>
    %527 = tpu.concatenate %524, %526 in 1 : vector<3x188xf32>, vector<3x68xf32> -> vector<3x256xf32>
    %cst_206 = arith.constant 0.000000e+00 : f32
    %528 = vector.broadcast %cst_206 : f32 to vector<3x256xf32>
    %529 = arith.select %438, %527, %528 : vector<3x256xi1>, vector<3x256xf32>
    %c0_207 = arith.constant 0 : index
    %c96 = arith.constant 96 : index
    %c0_208 = arith.constant 0 : index
    %530 = vector.load %arg4[%c0_207, %c96, %c0_208] : memref<1x100x256xf32, #tpu.memory_space<vmem>>, vector<1x4x256xf32>
    %531 = vector.shape_cast %530 : vector<1x4x256xf32> to vector<4x256xf32>
    %532 = vector.extract_strided_slice %529 {offsets = [0, 0], sizes = [1, 256], strides = [1, 1]} : vector<3x256xf32> to vector<1x256xf32>
    %533 = vector.broadcast %532 : vector<1x256xf32> to vector<4x256xf32>
    %534 = arith.mulf %533, %531 : vector<4x256xf32>
    %535 = arith.addf %514, %534 : vector<4x256xf32>
    %536 = vector.extract_strided_slice %529 {offsets = [1, 0], sizes = [1, 256], strides = [1, 1]} : vector<3x256xf32> to vector<1x256xf32>
    %537 = vector.broadcast %536 : vector<1x256xf32> to vector<4x256xf32>
    %538 = arith.mulf %537, %531 : vector<4x256xf32>
    %539 = arith.addf %518, %538 : vector<4x256xf32>
    %540 = vector.extract_strided_slice %529 {offsets = [2, 0], sizes = [1, 256], strides = [1, 1]} : vector<3x256xf32> to vector<1x256xf32>
    %541 = vector.broadcast %540 : vector<1x256xf32> to vector<4x256xf32>
    %542 = arith.mulf %541, %531 : vector<4x256xf32>
    %543 = arith.addf %522, %542 : vector<4x256xf32>
    %544 = tpu.concatenate %535, %539, %543 in 0 : vector<4x256xf32>, vector<4x256xf32>, vector<4x256xf32> -> vector<12x256xf32>
    %c0_209 = arith.constant 0 : index
    %c0_210 = arith.constant 0 : index
    %c0_211 = arith.constant 0 : index
    %545 = vector.load %arg5[%c0_209, %c0_210, %c0_211] : memref<1x12x256xf32, #tpu.memory_space<vmem>>, vector<1x12x256xf32>
    %546 = vector.shape_cast %545 : vector<1x12x256xf32> to vector<12x256xf32>
    %547 = vector.shape_cast %544 : vector<12x256xf32> to vector<1x12x256xf32>
    tpu.vector_store %arg5[%c0_209, %c0_210, %c0_211], %547 {strides = array<i32>} : memref<1x12x256xf32, #tpu.memory_space<vmem>>, vector<1x12x256xf32>,
    return
  }
  func.func @transform_0(%arg0: i32, %arg1: i32) -> (i32, i32, i32) {
    %c0_i32 = arith.constant 0 : i32
    %c0_i32_0 = arith.constant 0 : i32
    return %arg0, %c0_i32, %arg1 : i32, i32, i32
  }
  func.func @transform_1(%arg0: i32, %arg1: i32) -> (i32, i32, i32) {
    %c1_i32 = arith.constant 1 : i32
    %0 = arith.addi %arg1, %c1_i32 : i32
    %c0_i32 = arith.constant 0 : i32
    %c0_i32_0 = arith.constant 0 : i32
    return %arg0, %c0_i32, %0 : i32, i32, i32
  }
  func.func @transform_2(%arg0: i32, %arg1: i32) -> (i32, i32, i32) {
    %c0_i32 = arith.constant 0 : i32
    %c0_i32_0 = arith.constant 0 : i32
    return %arg0, %c0_i32, %arg1 : i32, i32, i32
  }
  func.func @transform_3(%arg0: i32, %arg1: i32) -> (i32, i32, i32) {
    %c0_i32 = arith.constant 0 : i32
    %c0_i32_0 = arith.constant 0 : i32
    return %arg0, %c0_i32, %arg1 : i32, i32, i32
  }
}

</mosaic_0001>

<llo_original>
// kernel: _lambda_.1
$region0: #{_lambda_.1}
  #allocation0 [shape = 'u32[]', space=smem, size = 0x4, offset = 0x4, fixed_abs, tag = 'smem constant byte address 0x4 - core index']
  #allocation1 [shape = 'u32[72,128]{1,0:T(1,128)}', space=vmem, size = 0x9000, scoped, tag = 'internal scratch']
  %s0 = inlined_call_operand.vmem [shape: f32[2,3,512], index: 0, kind: input, shape index: {}, may-alias: {0,1}]
  %s1 = inlined_call_operand.vmem [shape: f32[2,3,512], index: 1, kind: input, shape index: {}, may-alias: {0,1}]
  %s2 = inlined_call_operand.vmem [shape: f32[2,100,256], index: 2, kind: input, shape index: {}]
  %s3 = inlined_call_operand.vmem [shape: f32[2,12,256], index: 3, kind: output, shape index: {}]
  %s4 = sld [smem:[#allocation0]]
  $region45: #{_lambda_.1} parent=0
    _
  %s6 = ssub.s32 1, %s4
  %s7 = scalar_select 0, %s6, %s4
  loop: start=0, step=1, limit=4
  $region2: #{_lambda_.1} parent=0 // loop_pre_header
    _
  $region3: #{_lambda_.1} parent=0 // loop_header
    %s9 = sphi 0, %s13
    %p10 = scmp.ge.s32.totalorder %s9, 4
    %s16 = sphi 0, %s28
    %s17 = sphi 0, %s24
    %s18 = sphi 0, %s16
    %s19 = sphi 0, %s17
    %s20 = sphi 0, %s18
    %s21 = sphi 0, %s19
    %s33 = sphi 0, %s35
    %s36 = sphi 0, %s33
    %s37 = sphi 0, %s36
    %s53 = sphi 0, %s37
    %s63 = sphi 0, %s65
    %s66 = sphi 0, %s63
    %s67 = sphi 0, %s66
    %s83 = sphi 0, %s67
    %s91 = sphi 0, %s93
    %s94 = sphi 0, %s91
    %s95 = sphi 0, %s94
    %s111 = sphi 0, %s95
    %s119 = sphi 0, %s121
    %s122 = sphi 0, %s119
    %s123 = sphi 0, %s122
    %s139 = sphi 0, %s123
  $region4: #{_lambda_.1} parent=0 // loop_header_branch
    %12 = sbr.rel (%p10) target = $region8
  $region5: #{_lambda_.1} parent=0 // loop_body
    %s14 = ssub.s32 %s9, 1
    %s15 = ssub.s32 %s9, 2
    %s22 = sadd.s32 1, %s17
    %p23 = scmp.ge.s32.totalorder %s22, 1
    %s24 = scalar_select %p23, 0, %s22
    %s25 = sadd.s32 1, %s16
    %s26 = scalar_select %p23, %s25, %s16
    %p27 = scmp.ge.s32.totalorder %s26, 2
    %s28 = scalar_select %p27, 0, %s26
    %s29 = ssub.s32 %s16, %s28
    %s30 = ssub.s32 %s17, %s24
    %s31 = sor.u32 %s29, %s30
    %p32 = scmp.eq.s32.totalorder %s31, 0
    %s34 = sadd.s32 %s33, 1
    %s35 = scalar_select %p32, %s33, %s34
    %p38 = pneg %p32
    %p39 = scmp.eq.s32.totalorder %s9, 1
    %p40 = por %p38, %p39
    %p41 = scmp.ne.s32.totalorder %s33, %s36
    %p42 = scmp.eq.s32.totalorder %s9, 0
    %p43 = por %p41, %p42
    %p44 = scmp.ne.s32.totalorder %s33, %s36
    %p45 = scmp.eq.s32.totalorder %s14, 1
    %p46 = por %p44, %p45
    %p47 = scmp.ne.s32.totalorder %s36, %s37
    %p48 = scmp.eq.s32.totalorder %s14, 0
    %p49 = por %p47, %p48
    %p50 = scmp.ne.s32.totalorder %s36, %s37
    %p51 = scmp.eq.s32.totalorder %s15, 1
    %p52 = por %p50, %p51
    %p54 = scmp.ne.s32.totalorder %s37, %s53
    %p55 = scmp.eq.s32.totalorder %s15, 0
    %p56 = por %p54, %p55
    %s57 = sadd.s32 %s17, 1
    %s58 = sadd.s32 %s24, 1
    %s59 = ssub.s32 %s16, %s28
    %s60 = ssub.s32 %s57, %s58
    %s61 = sor.u32 %s59, %s60
    %p62 = scmp.eq.s32.totalorder %s61, 0
    %s64 = sadd.s32 %s63, 1
    %s65 = scalar_select %p62, %s63, %s64
    %p68 = pneg %p62
    %p69 = scmp.eq.s32.totalorder %s9, 1
    %p70 = por %p68, %p69
    %p71 = scmp.ne.s32.totalorder %s63, %s66
    %p72 = scmp.eq.s32.totalorder %s9, 0
    %p73 = por %p71, %p72
    %p74 = scmp.ne.s32.totalorder %s63, %s66
    %p75 = scmp.eq.s32.totalorder %s14, 1
    %p76 = por %p74, %p75
    %p77 = scmp.ne.s32.totalorder %s66, %s67
    %p78 = scmp.eq.s32.totalorder %s14, 0
    %p79 = por %p77, %p78
    %p80 = scmp.ne.s32.totalorder %s66, %s67
    %p81 = scmp.eq.s32.totalorder %s15, 1
    %p82 = por %p80, %p81
    %p84 = scmp.ne.s32.totalorder %s67, %s83
    %p85 = scmp.eq.s32.totalorder %s15, 0
    %p86 = por %p84, %p85
    %s87 = ssub.s32 %s16, %s28
    %s88 = ssub.s32 %s17, %s24
    %s89 = sor.u32 %s87, %s88
    %p90 = scmp.eq.s32.totalorder %s89, 0
    %s92 = sadd.s32 %s91, 1
    %s93 = scalar_select %p90, %s91, %s92
    %p96 = pneg %p90
    %p97 = scmp.eq.s32.totalorder %s9, 1
    %p98 = por %p96, %p97
    %p99 = scmp.ne.s32.totalorder %s91, %s94
    %p100 = scmp.eq.s32.totalorder %s9, 0
    %p101 = por %p99, %p100
    %p102 = scmp.ne.s32.totalorder %s91, %s94
    %p103 = scmp.eq.s32.totalorder %s14, 1
    %p104 = por %p102, %p103
    %p105 = scmp.ne.s32.totalorder %s94, %s95
    %p106 = scmp.eq.s32.totalorder %s14, 0
    %p107 = por %p105, %p106
    %p108 = scmp.ne.s32.totalorder %s94, %s95
    %p109 = scmp.eq.s32.totalorder %s15, 1
    %p110 = por %p108, %p109
    %p112 = scmp.ne.s32.totalorder %s95, %s111
    %p113 = scmp.eq.s32.totalorder %s15, 0
    %p114 = por %p112, %p113
    %s115 = ssub.s32 %s16, %s28
    %s116 = ssub.s32 %s17, %s24
    %s117 = sor.u32 %s115, %s116
    %p118 = scmp.eq.s32.totalorder %s117, 0
    %s120 = sadd.s32 %s119, 1
    %s121 = scalar_select %p118, %s119, %s120
    %p124 = pneg %p118
    %p125 = scmp.eq.s32.totalorder %s9, 1
    %p126 = por %p124, %p125
    %p127 = scmp.ne.s32.totalorder %s119, %s122
    %p128 = scmp.eq.s32.totalorder %s9, 0
    %p129 = por %p127, %p128
    %p130 = scmp.ne.s32.totalorder %s119, %s122
    %p131 = scmp.eq.s32.totalorder %s14, 1
    %p132 = por %p130, %p131
    %p133 = scmp.ne.s32.totalorder %s122, %s123
    %p134 = scmp.eq.s32.totalorder %s14, 0
    %p135 = por %p133, %p134
    %p136 = scmp.ne.s32.totalorder %s122, %s123
    %p137 = scmp.eq.s32.totalorder %s15, 1
    %p138 = por %p136, %p137
    %p140 = scmp.ne.s32.totalorder %s123, %s139
    %p141 = scmp.eq.s32.totalorder %s15, 0
    %p142 = por %p140, %p141
    %p143 = scmp.le.s32.totalorder 1, %s9
    %p144 = scmp.lt.s32.totalorder %s9, 3
    %p145 = pnand %p143, %p144
    %p146 = pneg %p145
    // Predicated region
    $region9: #{_lambda_.1} parent=5 // pred_check
      _
    $region10: #{_lambda_.1} parent=5 // pred_check_branch
      %148 = sbr.rel (%p145) target = $region12
    $region11: #{_lambda_.1} parent=5 // pred_region
      %s149 = ssub.s32 %s9, 1
    $region12: #{_lambda_.1} parent=5 // pred_fallthru
      _
    %p150 = scmp.lt.s32.totalorder %s9, 2
    // Predicated region
    $region13: #{_lambda_.1} parent=5 // pred_check
      %p151 = pneg %p150
    $region14: #{_lambda_.1} parent=5 // pred_check_branch
      %153 = sbr.rel (%p151) target = $region16
    $region15: #{_lambda_.1} parent=5 // pred_region
      // Predicated region
      $region17: #{_lambda_.1} parent=15 // pred_check
        %p154 = pneg %p43
      $region18: #{_lambda_.1} parent=15 // pred_check_branch
        %156 = sbr.rel (%p154) target = $region20
      $region19: #{_lambda_.1} parent=15 // pred_region
        %s157 = smul.u32 2, %s17
        %p158 = scmp.lt.s32.totalorder %s16, 1
        %s159 = scalar_select %p158, %s16, 1
        %p160 = scmp.lt.s32.totalorder %s157, 3
        %s161 = scalar_select %p160, %s157, 3
        %s162 = smul.addr %s159, 4
        %s163 = sadd.s32 %s161, %s162
        %s164 = smul.addr %s163, 4
        %s165 = scalar_lea.vmem %s0, %s164
        %s166 = smul.u32 2, %s17
      $region20: #{_lambda_.1} parent=15 // pred_fallthru
        _
      // Predicated region
      $region21: #{_lambda_.1} parent=15 // pred_check
        %p167 = pneg %p73
      $region22: #{_lambda_.1} parent=15 // pred_check_branch
        %169 = sbr.rel (%p167) target = $region24
      $region23: #{_lambda_.1} parent=15 // pred_region
        %s170 = sadd.s32 %s17, 1
        %s171 = smul.u32 2, %s170
        %p172 = scmp.lt.s32.totalorder %s16, 1
        %s173 = scalar_select %p172, %s16, 1
        %p174 = scmp.lt.s32.totalorder %s171, 3
        %s175 = scalar_select %p174, %s171, 3
        %s176 = smul.addr %s173, 4
        %s177 = sadd.s32 %s175, %s176
        %s178 = smul.addr %s177, 4
        %s179 = scalar_lea.vmem %s1, %s178
        %s180 = sadd.s32 %s17, 1
        %s181 = smul.u32 2, %s180
      $region24: #{_lambda_.1} parent=15 // pred_fallthru
        _
      // Predicated region
      $region25: #{_lambda_.1} parent=15 // pred_check
        %p182 = pneg %p101
      $region26: #{_lambda_.1} parent=15 // pred_check_branch
        %184 = sbr.rel (%p182) target = $region28
      $region27: #{_lambda_.1} parent=15 // pred_region
        %s185 = smul.u32 2, %s17
        %p186 = scmp.lt.s32.totalorder %s16, 1
        %s187 = scalar_select %p186, %s16, 1
        %p188 = scmp.lt.s32.totalorder %s185, 1
        %s189 = scalar_select %p188, %s185, 1
        %s190 = smul.addr %s187, 26
        %s191 = sadd.s32 %s189, %s190
        %s192 = smul.addr %s191, 8
        %s193 = scalar_lea.vmem %s2, %s192
        %s194 = smul.u32 2, %s17
      $region28: #{_lambda_.1} parent=15 // pred_fallthru
        _
    $region16: #{_lambda_.1} parent=5 // pred_fallthru
      _
    %p195 = scmp.le.s32.totalorder 1, %s9
    %p196 = scmp.lt.s32.totalorder %s9, 3
    %p197 = pnand %p195, %p196
    %p198 = pneg %p197
    // Predicated region
    $region29: #{_lambda_.1} parent=5 // pred_check
      _
    $region30: #{_lambda_.1} parent=5 // pred_check_branch
      %200 = sbr.rel (%p197) target = $region32
    $region31: #{_lambda_.1} parent=5 // pred_region
      %s201 = ssub.s32 %s9, 1
      %s202 = smul.u32 2, %s19
      %p203 = scmp.lt.s32.totalorder %s18, 1
      %s204 = scalar_select %p203, %s18, 1
      %p205 = scmp.lt.s32.totalorder %s202, 3
      %s206 = scalar_select %p205, %s202, 3
      %s207 = smul.addr %s204, 4
      %s208 = sadd.s32 %s206, %s207
      %s209 = smul.addr %s208, 4
      %s210 = scalar_lea.vmem %s0, %s209
      %p211 = pneg %p49
      %p212 = pneg %p46
      %s213 = sadd.s32 %s19, 1
      %s214 = smul.u32 2, %s213
      %p215 = scmp.lt.s32.totalorder %s18, 1
      %s216 = scalar_select %p215, %s18, 1
      %p217 = scmp.lt.s32.totalorder %s214, 3
      %s218 = scalar_select %p217, %s214, 3
      %s219 = smul.addr %s216, 4
      %s220 = sadd.s32 %s218, %s219
      %s221 = smul.addr %s220, 4
      %s222 = scalar_lea.vmem %s1, %s221
      %p223 = pneg %p79
      %p224 = pneg %p76
      %s225 = smul.u32 2, %s19
      %p226 = scmp.lt.s32.totalorder %s18, 1
      %s227 = scalar_select %p226, %s18, 1
      %p228 = scmp.lt.s32.totalorder %s225, 1
      %s229 = scalar_select %p228, %s225, 1
      %s230 = smul.addr %s227, 26
      %s231 = sadd.s32 %s229, %s230
      %s232 = smul.addr %s231, 8
      %s233 = scalar_lea.vmem %s2, %s232
      %p234 = pneg %p107
      %p235 = pneg %p104
      %p236 = pneg %p135
      %p237 = pneg %p132
      %s238 = smul.u32 2, %s19
      %p239 = scmp.lt.s32.totalorder %s18, 1
      %s240 = scalar_select %p239, %s18, 1
      %p241 = scmp.lt.s32.totalorder %s238, 1
      %s242 = scalar_select %p241, %s238, 1
      %s243 = smul.addr %s240, 4
      %s244 = sadd.s32 %s242, %s243
      %s245 = smul.addr %s244, 8
      %s246 = scalar_lea.vmem %s3, %s245
      %s247 = smul.u32 2, %s19
      %p248 = scmp.lt.s32.totalorder %s18, 1
      %s249 = scalar_select %p248, %s18, 1
      %p250 = scmp.lt.s32.totalorder %s247, 3
      %s251 = scalar_select %p250, %s247, 3
      %s252 = smul.addr %s249, 4
      %s253 = sadd.s32 %s251, %s252
      %s254 = smul.addr %s253, 4
      %s255 = scalar_lea.vmem %s0, %s254
      %s256 = smul.u32 2, %s19
      %s257 = sadd.s32 %s19, 1
      %s258 = smul.u32 2, %s257
      %p259 = scmp.lt.s32.totalorder %s18, 1
      %s260 = scalar_select %p259, %s18, 1
      %p261 = scmp.lt.s32.totalorder %s258, 3
      %s262 = scalar_select %p261, %s258, 3
      %s263 = smul.addr %s260, 4
      %s264 = sadd.s32 %s262, %s263
      %s265 = smul.addr %s264, 4
      %s266 = scalar_lea.vmem %s1, %s265
      %s267 = sadd.s32 %s19, 1
      %s268 = smul.u32 2, %s267
      %s269 = smul.u32 2, %s19
      %p270 = scmp.lt.s32.totalorder %s18, 1
      %s271 = scalar_select %p270, %s18, 1
      %p272 = scmp.lt.s32.totalorder %s269, 1
      %s273 = scalar_select %p272, %s269, 1
      %s274 = smul.addr %s271, 26
      %s275 = sadd.s32 %s273, %s274
      %s276 = smul.addr %s275, 8
      %s277 = scalar_lea.vmem %s2, %s276
      %s278 = smul.u32 2, %s19
      %s279 = smul.u32 2, %s19
      %p280 = scmp.lt.s32.totalorder %s18, 1
      %s281 = scalar_select %p280, %s18, 1
      %p282 = scmp.lt.s32.totalorder %s279, 1
      %s283 = scalar_select %p282, %s279, 1
      %s284 = smul.addr %s281, 4
      %s285 = sadd.s32 %s283, %s284
      %s286 = smul.addr %s285, 8
      %s287 = scalar_lea.vmem %s3, %s286
      %s288 = smul.u32 2, %s19
      %s289 = smul.u32 %s19, 256
      %v290 = vlaneseq
      %v291 = vand.u32 %v290, 127
      %v292 = vadd.s32 %v291, 128
      %v293 = vstv %s289
      %v294 = vadd.s32 %v293, %v291
      %v295 = vadd.s32 %v293, %v292
      %vm296 = vcmp.lt.s32.totalorder %v294, 0
      %v297 = vsub.s32 0, %v294
      %v298 = vsel %vm296, %v297, %v294
      %v299 = vshrl.u32 %v298, 4
      %v300 = vand.u32 %v298, 15
      %v301 = vsub.s32 0, %v300
      %v302 = vsel %vm296, %v301, %v300
      %vm303 = vcmp.lt.s32.totalorder %v295, 0
      %v304 = vsub.s32 0, %v295
      %v305 = vsel %vm303, %v304, %v295
      %v306 = vshrl.u32 %v305, 4
      %v307 = vand.u32 %v305, 15
      %v308 = vsub.s32 0, %v307
      %v309 = vsel %vm303, %v308, %v307
      %vm310 = vcmp.ne.s32.totalorder %v302, 0
      %vm311 = vcmp.ne.s32.totalorder %v309, 0
      %vm312 = vcmp.lt.s32.totalorder %v302, 0
      %vm313 = vcmp.lt.s32.totalorder %v309, 0
      %vm314 = vmand %vm312, %vm310
      %vm315 = vmand %vm313, %vm311
      %v316 = vadd.s32 %v302, 16
      %v317 = vadd.s32 %v309, 16
      %v318 = vsel %vm314, %v316, %v302
      %v319 = vsel %vm315, %v317, %v309
      %vm320 = vcmp.ge.s32.totalorder %v318, 2
      %vm321 = vcmp.ge.s32.totalorder %v319, 2
      %v322 = vld [vmem:[%s255] sm:$0x77]
      %324 = vst [vmem:[#allocation1] ss:$2 sm:$0xff] %v322
      %v325 = vld.sshfl [vmem:[#allocation1] sm:$0xff pattern:$0x75316420]
      %v326 = vld.sshfl [vmem:[#allocation1 + $0x8] sm:$0xff pattern:$0x75316420]
      %v329 = vsel %vm320, %v325, 0.0
      %v330 = vsel %vm321, %v326, 0.0
      %v331 = vld [vmem:[%s277] sm:$0xf]
      %v332 = vld [vmem:[%s277 + $0x8] sm:$0xf]
      %v333 = vperm.slane %v329, 0
      %v334 = vperm.slane %v330, 0
      %v335 = vmul.f32 %v333, %v331
      %v336 = vmul.f32 %v334, %v332
      %v337 = vadd.f32 %v335, 0.0
      %v338 = vadd.f32 %v336, 0.0
      %v339 = vperm.slane %v329, 1
      %v340 = vperm.slane %v330, 1
      %v341 = vmul.f32 %v339, %v331
      %v342 = vmul.f32 %v340, %v332
      %v343 = vadd.f32 %v341, 0.0
      %v344 = vadd.f32 %v342, 0.0
      %v345 = vperm.slane %v329, 2
      %v346 = vperm.slane %v330, 2
      %v347 = vmul.f32 %v345, %v331
      %v348 = vmul.f32 %v346, %v332
      %v349 = vadd.f32 %v347, 0.0
      %v350 = vadd.f32 %v348, 0.0
      %v351 = vld [vmem:[%s255] sm:$0x77]
      %v352 = vld [vmem:[%s266] sm:$0x7]
      %354 = vst [vmem:[#allocation1] ss:$2 sm:$0xff] %v351
      %v355 = vld.sshfl [vmem:[#allocation1] sm:$0xff pattern:$0x75316420]
      %v356 = vld.sshfl [vmem:[#allocation1 + $0x8] sm:$0xff pattern:$0x75316420]
      %357 = vrot.lane.b32.xlu0 %v355, 112
      %v358 = vpop.permute.xlu0 %357
      %359 = vrot.lane.b32.xlu0 %v356, 112
      %v360 = vpop.permute.xlu0 %359
      %vm361 = vcmask 916480
      %v362 = vsel %vm361, %v358, %v360
      %366 = vst [vmem:[#allocation1] ss:$2 sm:$0xff] %v352
      %v367 = vld.sshfl [vmem:[#allocation1] sm:$0xff pattern:$0x75316420]
      %368 = vrot.lane.b32.xlu0 %v367, 112
      %v369 = vpop.permute.xlu0 %368
      %v371 = vsel %vm361, %v360, %v369
      %v372 = vsel %vm320, %v362, 0.0
      %v373 = vsel %vm321, %v371, 0.0
      %v374 = vld [vmem:[%s277 + $0x20] sm:$0xf0]
      %v375 = vld [vmem:[%s277 + $0x28] sm:$0xf0]
      %v376 = vperm.slane %v372, 0
      %v377 = vperm.slane %v373, 0
      %v378 = vmul.f32 %v376, %v374
      %v379 = vmul.f32 %v377, %v375
      %v382 = vrot.slane %v378, 4
      %v383 = vrot.slane %v379, 4
      %v386 = vadd.f32 %v337, %v382
      %v387 = vadd.f32 %v338, %v383
      %v388 = vperm.slane %v372, 1
      %v389 = vperm.slane %v373, 1
      %v390 = vmul.f32 %v388, %v374
      %v391 = vmul.f32 %v389, %v375
      %v394 = vrot.slane %v390, 4
      %v395 = vrot.slane %v391, 4
      %v398 = vadd.f32 %v343, %v394
      %v399 = vadd.f32 %v344, %v395
      %v400 = vperm.slane %v372, 2
      %v401 = vperm.slane %v373, 2
      %v402 = vmul.f32 %v400, %v374
      %v403 = vmul.f32 %v401, %v375
      %v406 = vrot.slane %v402, 4
      %v407 = vrot.slane %v403, 4
      %v410 = vadd.f32 %v349, %v406
      %v411 = vadd.f32 %v350, %v407
      %v412 = vld [vmem:[%s255] sm:$0x77]
      %v413 = vld [vmem:[%s266] sm:$0x7]
      %415 = vst [vmem:[#allocation1] ss:$2 sm:$0xff] %v412
      %v416 = vld.sshfl [vmem:[#allocation1] sm:$0xff pattern:$0x75316420]
      %v417 = vld.sshfl [vmem:[#allocation1 + $0x8] sm:$0xff pattern:$0x75316420]
      %418 = vrot.lane.b32.xlu0 %v416, 96
      %v419 = vpop.permute.xlu0 %418
      %420 = vrot.lane.b32.xlu0 %v417, 96
      %v421 = vpop.permute.xlu0 %420
      %vm422 = vcmask 785408
      %v423 = vsel %vm422, %v419, %v421
      %427 = vst [vmem:[#allocation1] ss:$2 sm:$0xff] %v413
      %v428 = vld.sshfl [vmem:[#allocation1] sm:$0xff pattern:$0x75316420]
      %429 = vrot.lane.b32.xlu0 %v428, 96
      %v430 = vpop.permute.xlu0 %429
      %v432 = vsel %vm422, %v421, %v430
      %v433 = vsel %vm320, %v423, 0.0
      %v434 = vsel %vm321, %v432, 0.0
      %v435 = vld [vmem:[%s277 + $0x50] sm:$0xf]
      %v436 = vld [vmem:[%s277 + $0x58] sm:$0xf]
      %v437 = vperm.slane %v433, 0
      %v438 = vperm.slane %v434, 0
      %v439 = vmul.f32 %v437, %v435
      %v440 = vmul.f32 %v438, %v436
      %v441 = vadd.f32 %v386, %v439
      %v442 = vadd.f32 %v387, %v440
      %v443 = vperm.slane %v433, 1
      %v444 = vperm.slane %v434, 1
      %v445 = vmul.f32 %v443, %v435
      %v446 = vmul.f32 %v444, %v436
      %v447 = vadd.f32 %v398, %v445
      %v448 = vadd.f32 %v399, %v446
      %v449 = vperm.slane %v433, 2
      %v450 = vperm.slane %v434, 2
      %v451 = vmul.f32 %v449, %v435
      %v452 = vmul.f32 %v450, %v436
      %v453 = vadd.f32 %v410, %v451
      %v454 = vadd.f32 %v411, %v452
      %v455 = vld [vmem:[%s255] sm:$0x77]
      %v456 = vld [vmem:[%s266] sm:$0x7]
      %458 = vst [vmem:[#allocation1] ss:$2 sm:$0xff] %v455
      %v459 = vld.sshfl [vmem:[#allocation1] sm:$0xff pattern:$0x75316420]
      %v460 = vld.sshfl [vmem:[#allocation1 + $0x8] sm:$0xff pattern:$0x75316420]
      %461 = vrot.lane.b32.xlu0 %v459, 80
      %v462 = vpop.permute.xlu0 %461
      %463 = vrot.lane.b32.xlu0 %v460, 80
      %v464 = vpop.permute.xlu0 %463
      %vm465 = vcmask 654336
      %v466 = vsel %vm465, %v462, %v464
      %470 = vst [vmem:[#allocation1] ss:$2 sm:$0xff] %v456
      %v471 = vld.sshfl [vmem:[#allocation1] sm:$0xff pattern:$0x75316420]
      %472 = vrot.lane.b32.xlu0 %v471, 80
      %v473 = vpop.permute.xlu0 %472
      %v475 = vsel %vm465, %v464, %v473
      %v476 = vsel %vm320, %v466, 0.0
      %v477 = vsel %vm321, %v475, 0.0
      %v478 = vld [vmem:[%s277 + $0x70] sm:$0xf0]
      %v479 = vld [vmem:[%s277 + $0x78] sm:$0xf0]
      %v480 = vperm.slane %v476, 0
      %v481 = vperm.slane %v477, 0
      %v482 = vmul.f32 %v480, %v478
      %v483 = vmul.f32 %v481, %v479
      %v486 = vrot.slane %v482, 4
      %v487 = vrot.slane %v483, 4
      %v490 = vadd.f32 %v441, %v486
      %v491 = vadd.f32 %v442, %v487
      %v492 = vperm.slane %v476, 1
      %v493 = vperm.slane %v477, 1
      %v494 = vmul.f32 %v492, %v478
      %v495 = vmul.f32 %v493, %v479
      %v498 = vrot.slane %v494, 4
      %v499 = vrot.slane %v495, 4
      %v502 = vadd.f32 %v447, %v498
      %v503 = vadd.f32 %v448, %v499
      %v504 = vperm.slane %v476, 2
      %v505 = vperm.slane %v477, 2
      %v506 = vmul.f32 %v504, %v478
      %v507 = vmul.f32 %v505, %v479
      %v510 = vrot.slane %v506, 4
      %v511 = vrot.slane %v507, 4
      %v514 = vadd.f32 %v453, %v510
      %v515 = vadd.f32 %v454, %v511
      %v516 = vld [vmem:[%s255] sm:$0x77]
      %v517 = vld [vmem:[%s266] sm:$0x7]
      %519 = vst [vmem:[#allocation1] ss:$2 sm:$0xff] %v516
      %v520 = vld.sshfl [vmem:[#allocation1] sm:$0xff pattern:$0x75316420]
      %v521 = vld.sshfl [vmem:[#allocation1 + $0x8] sm:$0xff pattern:$0x75316420]
      %522 = vrot.lane.b32.xlu0 %v520, 64
      %v523 = vpop.permute.xlu0 %522
      %524 = vrot.lane.b32.xlu0 %v521, 64
      %v525 = vpop.permute.xlu0 %524
      %vm526 = vcmask 523264
      %v527 = vsel %vm526, %v523, %v525
      %531 = vst [vmem:[#allocation1] ss:$2 sm:$0xff] %v517
      %v532 = vld.sshfl [vmem:[#allocation1] sm:$0xff pattern:$0x75316420]
      %533 = vrot.lane.b32.xlu0 %v532, 64
      %v534 = vpop.permute.xlu0 %533
      %v536 = vsel %vm526, %v525, %v534
      %v537 = vsel %vm320, %v527, 0.0
      %v538 = vsel %vm321, %v536, 0.0
      %v539 = vld [vmem:[%s277 + $0xa0] sm:$0xf]
      %v540 = vld [vmem:[%s277 + $0xa8] sm:$0xf]
      %v541 = vperm.slane %v537, 0
      %v542 = vperm.slane %v538, 0
      %v543 = vmul.f32 %v541, %v539
      %v544 = vmul.f32 %v542, %v540
      %v545 = vadd.f32 %v490, %v543
      %v546 = vadd.f32 %v491, %v544
      %v547 = vperm.slane %v537, 1
      %v548 = vperm.slane %v538, 1
      %v549 = vmul.f32 %v547, %v539
      %v550 = vmul.f32 %v548, %v540
      %v551 = vadd.f32 %v502, %v549
      %v552 = vadd.f32 %v503, %v550
      %v553 = vperm.slane %v537, 2
      %v554 = vperm.slane %v538, 2
      %v555 = vmul.f32 %v553, %v539
      %v556 = vmul.f32 %v554, %v540
      %v557 = vadd.f32 %v514, %v555
      %v558 = vadd.f32 %v515, %v556
      %vm559 = vcmp.ge.s32.totalorder %v318, 1
      %vm560 = vcmp.ge.s32.totalorder %v319, 1
      %v561 = vld [vmem:[%s255] sm:$0x77]
      %v562 = vld [vmem:[%s266] sm:$0x7]
      %564 = vst [vmem:[#allocation1] ss:$2 sm:$0xff] %v561
      %v565 = vld.sshfl [vmem:[#allocation1] sm:$0xff pattern:$0x75316420]
      %v566 = vld.sshfl [vmem:[#allocation1 + $0x8] sm:$0xff pattern:$0x75316420]
      %567 = vrot.lane.b32.xlu0 %v565, 127
      %v568 = vpop.permute.xlu0 %567
      %569 = vrot.lane.b32.xlu0 %v566, 127
      %v570 = vpop.permute.xlu0 %569
      %vm571 = vcmask 1039360
      %v572 = vsel %vm571, %v568, %v570
      %576 = vst [vmem:[#allocation1] ss:$2 sm:$0xff] %v562
      %v577 = vld.sshfl [vmem:[#allocation1] sm:$0xff pattern:$0x75316420]
      %578 = vrot.lane.b32.xlu0 %v577, 127
      %v579 = vpop.permute.xlu0 %578
      %v581 = vsel %vm571, %v570, %v579
      %v582 = vsel %vm559, %v572, 0.0
      %v583 = vsel %vm560, %v581, 0.0
      %v584 = vld [vmem:[%s277] sm:$0xf0]
      %v585 = vld [vmem:[%s277 + $0x8] sm:$0xf0]
      %v586 = vperm.slane %v582, 0
      %v587 = vperm.slane %v583, 0
      %v588 = vmul.f32 %v586, %v584
      %v589 = vmul.f32 %v587, %v585
      %v592 = vrot.slane %v588, 4
      %v593 = vrot.slane %v589, 4
      %v596 = vadd.f32 %v545, %v592
      %v597 = vadd.f32 %v546, %v593
      %v598 = vperm.slane %v582, 1
      %v599 = vperm.slane %v583, 1
      %v600 = vmul.f32 %v598, %v584
      %v601 = vmul.f32 %v599, %v585
      %v604 = vrot.slane %v600, 4
      %v605 = vrot.slane %v601, 4
      %v608 = vadd.f32 %v551, %v604
      %v609 = vadd.f32 %v552, %v605
      %v610 = vperm.slane %v582, 2
      %v611 = vperm.slane %v583, 2
      %v612 = vmul.f32 %v610, %v584
      %v613 = vmul.f32 %v611, %v585
      %v616 = vrot.slane %v612, 4
      %v617 = vrot.slane %v613, 4
      %v620 = vadd.f32 %v557, %v616
      %v621 = vadd.f32 %v558, %v617
      %v622 = vld [vmem:[%s255] sm:$0x77]
      %v623 = vld [vmem:[%s266] sm:$0x7]
      %625 = vst [vmem:[#allocation1] ss:$2 sm:$0xff] %v622
      %v626 = vld.sshfl [vmem:[#allocation1] sm:$0xff pattern:$0x75316420]
      %v627 = vld.sshfl [vmem:[#allocation1 + $0x8] sm:$0xff pattern:$0x75316420]
      %628 = vrot.lane.b32.xlu0 %v626, 111
      %v629 = vpop.permute.xlu0 %628
      %630 = vrot.lane.b32.xlu0 %v627, 111
      %v631 = vpop.permute.xlu0 %630
      %vm632 = vcmask 908288
      %v633 = vsel %vm632, %v629, %v631
      %637 = vst [vmem:[#allocation1] ss:$2 sm:$0xff] %v623
      %v638 = vld.sshfl [vmem:[#allocation1] sm:$0xff pattern:$0x75316420]
      %639 = vrot.lane.b32.xlu0 %v638, 111
      %v640 = vpop.permute.xlu0 %639
      %v642 = vsel %vm632, %v631, %v640
      %v643 = vsel %vm559, %v633, 0.0
      %v644 = vsel %vm560, %v642, 0.0
      %v645 = vld [vmem:[%s277 + $0x30] sm:$0xf]
      %v646 = vld [vmem:[%s277 + $0x38] sm:$0xf]
      %v647 = vperm.slane %v643, 0
      %v648 = vperm.slane %v644, 0
      %v649 = vmul.f32 %v647, %v645
      %v650 = vmul.f32 %v648, %v646
      %v651 = vadd.f32 %v596, %v649
      %v652 = vadd.f32 %v597, %v650
      %v653 = vperm.slane %v643, 1
      %v654 = vperm.slane %v644, 1
      %v655 = vmul.f32 %v653, %v645
      %v656 = vmul.f32 %v654, %v646
      %v657 = vadd.f32 %v608, %v655
      %v658 = vadd.f32 %v609, %v656
      %v659 = vperm.slane %v643, 2
      %v660 = vperm.slane %v644, 2
      %v661 = vmul.f32 %v659, %v645
      %v662 = vmul.f32 %v660, %v646
      %v663 = vadd.f32 %v620, %v661
      %v664 = vadd.f32 %v621, %v662
      %v665 = vld [vmem:[%s255] sm:$0x77]
      %v666 = vld [vmem:[%s266] sm:$0x7]
      %668 = vst [vmem:[#allocation1] ss:$2 sm:$0xff] %v665
      %v669 = vld.sshfl [vmem:[#allocation1] sm:$0xff pattern:$0x75316420]
      %v670 = vld.sshfl [vmem:[#allocation1 + $0x8] sm:$0xff pattern:$0x75316420]
      %671 = vrot.lane.b32.xlu0 %v669, 95
      %v672 = vpop.permute.xlu0 %671
      %673 = vrot.lane.b32.xlu0 %v670, 95
      %v674 = vpop.permute.xlu0 %673
      %vm675 = vcmask 777216
      %v676 = vsel %vm675, %v672, %v674
      %680 = vst [vmem:[#allocation1] ss:$2 sm:$0xff] %v666
      %v681 = vld.sshfl [vmem:[#allocation1] sm:$0xff pattern:$0x75316420]
      %682 = vrot.lane.b32.xlu0 %v681, 95
      %v683 = vpop.permute.xlu0 %682
      %v685 = vsel %vm675, %v674, %v683
      %v686 = vsel %vm559, %v676, 0.0
      %v687 = vsel %vm560, %v685, 0.0
      %v688 = vld [vmem:[%s277 + $0x50] sm:$0xf0]
      %v689 = vld [vmem:[%s277 + $0x58] sm:$0xf0]
      %v690 = vperm.slane %v686, 0
      %v691 = vperm.slane %v687, 0
      %v692 = vmul.f32 %v690, %v688
      %v693 = vmul.f32 %v691, %v689
      %v696 = vrot.slane %v692, 4
      %v697 = vrot.slane %v693, 4
      %v700 = vadd.f32 %v651, %v696
      %v701 = vadd.f32 %v652, %v697
      %v702 = vperm.slane %v686, 1
      %v703 = vperm.slane %v687, 1
      %v704 = vmul.f32 %v702, %v688
      %v705 = vmul.f32 %v703, %v689
      %v708 = vrot.slane %v704, 4
      %v709 = vrot.slane %v705, 4
      %v712 = vadd.f32 %v657, %v708
      %v713 = vadd.f32 %v658, %v709
      %v714 = vperm.slane %v686, 2
      %v715 = vperm.slane %v687, 2
      %v716 = vmul.f32 %v714, %v688
      %v717 = vmul.f32 %v715, %v689
      %v720 = vrot.slane %v716, 4
      %v721 = vrot.slane %v717, 4
      %v724 = vadd.f32 %v663, %v720
      %v725 = vadd.f32 %v664, %v721
      %v726 = vld [vmem:[%s255] sm:$0x77]
      %v727 = vld [vmem:[%s266] sm:$0x7]
      %729 = vst [vmem:[#allocation1] ss:$2 sm:$0xff] %v726
      %v730 = vld.sshfl [vmem:[#allocation1] sm:$0xff pattern:$0x75316420]
      %v731 = vld.sshfl [vmem:[#allocation1 + $0x8] sm:$0xff pattern:$0x75316420]
      %732 = vrot.lane.b32.xlu0 %v730, 79
      %v733 = vpop.permute.xlu0 %732
      %734 = vrot.lane.b32.xlu0 %v731, 79
      %v735 = vpop.permute.xlu0 %734
      %vm736 = vcmask 646144
      %v737 = vsel %vm736, %v733, %v735
      %741 = vst [vmem:[#allocation1] ss:$2 sm:$0xff] %v727
      %v742 = vld.sshfl [vmem:[#allocation1] sm:$0xff pattern:$0x75316420]
      %743 = vrot.lane.b32.xlu0 %v742, 79
      %v744 = vpop.permute.xlu0 %743
      %v746 = vsel %vm736, %v735, %v744
      %v747 = vsel %vm559, %v737, 0.0
      %v748 = vsel %vm560, %v746, 0.0
      %v749 = vld [vmem:[%s277 + $0x80] sm:$0xf]
      %v750 = vld [vmem:[%s277 + $0x88] sm:$0xf]
      %v751 = vperm.slane %v747, 0
      %v752 = vperm.slane %v748, 0
      %v753 = vmul.f32 %v751, %v749
      %v754 = vmul.f32 %v752, %v750
      %v755 = vadd.f32 %v700, %v753
      %v756 = vadd.f32 %v701, %v754
      %v757 = vperm.slane %v747, 1
      %v758 = vperm.slane %v748, 1
      %v759 = vmul.f32 %v757, %v749
      %v760 = vmul.f32 %v758, %v750
      %v761 = vadd.f32 %v712, %v759
      %v762 = vadd.f32 %v713, %v760
      %v763 = vperm.slane %v747, 2
      %v764 = vperm.slane %v748, 2
      %v765 = vmul.f32 %v763, %v749
      %v766 = vmul.f32 %v764, %v750
      %v767 = vadd.f32 %v724, %v765
      %v768 = vadd.f32 %v725, %v766
      %v769 = vld [vmem:[%s255] sm:$0x77]
      %v770 = vld [vmem:[%s266] sm:$0x7]
      %772 = vst [vmem:[#allocation1] ss:$2 sm:$0xff] %v769
      %v773 = vld.sshfl [vmem:[#allocation1] sm:$0xff pattern:$0x75316420]
      %v774 = vld.sshfl [vmem:[#allocation1 + $0x8] sm:$0xff pattern:$0x75316420]
      %775 = vrot.lane.b32.xlu0 %v773, 63
      %v776 = vpop.permute.xlu0 %775
      %777 = vrot.lane.b32.xlu0 %v774, 63
      %v778 = vpop.permute.xlu0 %777
      %vm779 = vcmask 515072
      %v780 = vsel %vm779, %v776, %v778
      %784 = vst [vmem:[#allocation1] ss:$2 sm:$0xff] %v770
      %v785 = vld.sshfl [vmem:[#allocation1] sm:$0xff pattern:$0x75316420]
      %786 = vrot.lane.b32.xlu0 %v785, 63
      %v787 = vpop.permute.xlu0 %786
      %v789 = vsel %vm779, %v778, %v787
      %v790 = vsel %vm559, %v780, 0.0
      %v791 = vsel %vm560, %v789, 0.0
      %v792 = vld [vmem:[%s277 + $0xa0] sm:$0xf0]
      %v793 = vld [vmem:[%s277 + $0xa8] sm:$0xf0]
      %v794 = vperm.slane %v790, 0
      %v795 = vperm.slane %v791, 0
      %v796 = vmul.f32 %v794, %v792
      %v797 = vmul.f32 %v795, %v793
      %v800 = vrot.slane %v796, 4
      %v801 = vrot.slane %v797, 4
      %v804 = vadd.f32 %v755, %v800
      %v805 = vadd.f32 %v756, %v801
      %v806 = vperm.slane %v790, 1
      %v807 = vperm.slane %v791, 1
      %v808 = vmul.f32 %v806, %v792
      %v809 = vmul.f32 %v807, %v793
      %v812 = vrot.slane %v808, 4
      %v813 = vrot.slane %v809, 4
      %v816 = vadd.f32 %v761, %v812
      %v817 = vadd.f32 %v762, %v813
      %v818 = vperm.slane %v790, 2
      %v819 = vperm.slane %v791, 2
      %v820 = vmul.f32 %v818, %v792
      %v821 = vmul.f32 %v819, %v793
      %v824 = vrot.slane %v820, 4
      %v825 = vrot.slane %v821, 4
      %v828 = vadd.f32 %v767, %v824
      %v829 = vadd.f32 %v768, %v825
      %v830 = vld [vmem:[%s255] sm:$0x77]
      %v831 = vld [vmem:[%s266] sm:$0x7]
      %833 = vst [vmem:[#allocation1] ss:$2 sm:$0xff] %v830
      %v834 = vld.sshfl [vmem:[#allocation1] sm:$0xff pattern:$0x75316420]
      %v835 = vld.sshfl [vmem:[#allocation1 + $0x8] sm:$0xff pattern:$0x75316420]
      %836 = vrot.lane.b32.xlu0 %v834, 126
      %v837 = vpop.permute.xlu0 %836
      %838 = vrot.lane.b32.xlu0 %v835, 126
      %v839 = vpop.permute.xlu0 %838
      %vm840 = vcmask 1031168
      %v841 = vsel %vm840, %v837, %v839
      %845 = vst [vmem:[#allocation1] ss:$2 sm:$0xff] %v831
      %v846 = vld.sshfl [vmem:[#allocation1] sm:$0xff pattern:$0x75316420]
      %847 = vrot.lane.b32.xlu0 %v846, 126
      %v848 = vpop.permute.xlu0 %847
      %v850 = vsel %vm840, %v839, %v848
      %v851 = vld [vmem:[%s277 + $0x10] sm:$0xf]
      %v852 = vld [vmem:[%s277 + $0x18] sm:$0xf]
      %v853 = vperm.slane %v841, 0
      %v854 = vperm.slane %v850, 0
      %v855 = vmul.f32 %v853, %v851
      %v856 = vmul.f32 %v854, %v852
      %v857 = vadd.f32 %v804, %v855
      %v858 = vadd.f32 %v805, %v856
      %v859 = vperm.slane %v841, 1
      %v860 = vperm.slane %v850, 1
      %v861 = vmul.f32 %v859, %v851
      %v862 = vmul.f32 %v860, %v852
      %v863 = vadd.f32 %v816, %v861
      %v864 = vadd.f32 %v817, %v862
      %v865 = vperm.slane %v841, 2
      %v866 = vperm.slane %v850, 2
      %v867 = vmul.f32 %v865, %v851
      %v868 = vmul.f32 %v866, %v852
      %v869 = vadd.f32 %v828, %v867
      %v870 = vadd.f32 %v829, %v868
      %v871 = vld [vmem:[%s255] sm:$0x77]
      %v872 = vld [vmem:[%s266] sm:$0x7]
      %874 = vst [vmem:[#allocation1] ss:$2 sm:$0xff] %v871
      %v875 = vld.sshfl [vmem:[#allocation1] sm:$0xff pattern:$0x75316420]
      %v876 = vld.sshfl [vmem:[#allocation1 + $0x8] sm:$0xff pattern:$0x75316420]
      %877 = vrot.lane.b32.xlu0 %v875, 110
      %v878 = vpop.permute.xlu0 %877
      %879 = vrot.lane.b32.xlu0 %v876, 110
      %v880 = vpop.permute.xlu0 %879
      %vm881 = vcmask 900096
      %v882 = vsel %vm881, %v878, %v880
      %886 = vst [vmem:[#allocation1] ss:$2 sm:$0xff] %v872
      %v887 = vld.sshfl [vmem:[#allocation1] sm:$0xff pattern:$0x75316420]
      %888 = vrot.lane.b32.xlu0 %v887, 110
      %v889 = vpop.permute.xlu0 %888
      %v891 = vsel %vm881, %v880, %v889
      %v892 = vld [vmem:[%s277 + $0x30] sm:$0xf0]
      %v893 = vld [vmem:[%s277 + $0x38] sm:$0xf0]
      %v894 = vperm.slane %v882, 0
      %v895 = vperm.slane %v891, 0
      %v896 = vmul.f32 %v894, %v892
      %v897 = vmul.f32 %v895, %v893
      %v900 = vrot.slane %v896, 4
      %v901 = vrot.slane %v897, 4
      %v904 = vadd.f32 %v857, %v900
      %v905 = vadd.f32 %v858, %v901
      %v906 = vperm.slane %v882, 1
      %v907 = vperm.slane %v891, 1
      %v908 = vmul.f32 %v906, %v892
      %v909 = vmul.f32 %v907, %v893
      %v912 = vrot.slane %v908, 4
      %v913 = vrot.slane %v909, 4
      %v916 = vadd.f32 %v863, %v912
      %v917 = vadd.f32 %v864, %v913
      %v918 = vperm.slane %v882, 2
      %v919 = vperm.slane %v891, 2
      %v920 = vmul.f32 %v918, %v892
      %v921 = vmul.f32 %v919, %v893
      %v924 = vrot.slane %v920, 4
      %v925 = vrot.slane %v921, 4
      %v928 = vadd.f32 %v869, %v924
      %v929 = vadd.f32 %v870, %v925
      %v930 = vld [vmem:[%s255] sm:$0x77]
      %v931 = vld [vmem:[%s266] sm:$0x7]
      %933 = vst [vmem:[#allocation1] ss:$2 sm:$0xff] %v930
      %v934 = vld.sshfl [vmem:[#allocation1] sm:$0xff pattern:$0x75316420]
      %v935 = vld.sshfl [vmem:[#allocation1 + $0x8] sm:$0xff pattern:$0x75316420]
      %936 = vrot.lane.b32.xlu0 %v934, 94
      %v937 = vpop.permute.xlu0 %936
      %938 = vrot.lane.b32.xlu0 %v935, 94
      %v939 = vpop.permute.xlu0 %938
      %vm940 = vcmask 769024
      %v941 = vsel %vm940, %v937, %v939
      %945 = vst [vmem:[#allocation1] ss:$2 sm:$0xff] %v931
      %v946 = vld.sshfl [vmem:[#allocation1] sm:$0xff pattern:$0x75316420]
      %947 = vrot.lane.b32.xlu0 %v946, 94
      %v948 = vpop.permute.xlu0 %947
      %v950 = vsel %vm940, %v939, %v948
      %v951 = vld [vmem:[%s277 + $0x60] sm:$0xf]
      %v952 = vld [vmem:[%s277 + $0x68] sm:$0xf]
      %v953 = vperm.slane %v941, 0
      %v954 = vperm.slane %v950, 0
      %v955 = vmul.f32 %v953, %v951
      %v956 = vmul.f32 %v954, %v952
      %v957 = vadd.f32 %v904, %v955
      %v958 = vadd.f32 %v905, %v956
      %v959 = vperm.slane %v941, 1
      %v960 = vperm.slane %v950, 1
      %v961 = vmul.f32 %v959, %v951
      %v962 = vmul.f32 %v960, %v952
      %v963 = vadd.f32 %v916, %v961
      %v964 = vadd.f32 %v917, %v962
      %v965 = vperm.slane %v941, 2
      %v966 = vperm.slane %v950, 2
      %v967 = vmul.f32 %v965, %v951
      %v968 = vmul.f32 %v966, %v952
      %v969 = vadd.f32 %v928, %v967
      %v970 = vadd.f32 %v929, %v968
      %v971 = vld [vmem:[%s255] sm:$0x77]
      %v972 = vld [vmem:[%s266] sm:$0x7]
      %974 = vst [vmem:[#allocation1] ss:$2 sm:$0xff] %v971
      %v975 = vld.sshfl [vmem:[#allocation1] sm:$0xff pattern:$0x75316420]
      %v976 = vld.sshfl [vmem:[#allocation1 + $0x8] sm:$0xff pattern:$0x75316420]
      %977 = vrot.lane.b32.xlu0 %v975, 78
      %v978 = vpop.permute.xlu0 %977
      %979 = vrot.lane.b32.xlu0 %v976, 78
      %v980 = vpop.permute.xlu0 %979
      %vm981 = vcmask 637952
      %v982 = vsel %vm981, %v978, %v980
      %986 = vst [vmem:[#allocation1] ss:$2 sm:$0xff] %v972
      %v987 = vld.sshfl [vmem:[#allocation1] sm:$0xff pattern:$0x75316420]
      %988 = vrot.lane.b32.xlu0 %v987, 78
      %v989 = vpop.permute.xlu0 %988
      %v991 = vsel %vm981, %v980, %v989
      %v992 = vld [vmem:[%s277 + $0x80] sm:$0xf0]
      %v993 = vld [vmem:[%s277 + $0x88] sm:$0xf0]
      %v994 = vperm.slane %v982, 0
      %v995 = vperm.slane %v991, 0
      %v996 = vmul.f32 %v994, %v992
      %v997 = vmul.f32 %v995, %v993
      %v1000 = vrot.slane %v996, 4
      %v1001 = vrot.slane %v997, 4
      %v1004 = vadd.f32 %v957, %v1000
      %v1005 = vadd.f32 %v958, %v1001
      %v1006 = vperm.slane %v982, 1
      %v1007 = vperm.slane %v991, 1
      %v1008 = vmul.f32 %v1006, %v992
      %v1009 = vmul.f32 %v1007, %v993
      %v1012 = vrot.slane %v1008, 4
      %v1013 = vrot.slane %v1009, 4
      %v1016 = vadd.f32 %v963, %v1012
      %v1017 = vadd.f32 %v964, %v1013
      %v1018 = vperm.slane %v982, 2
      %v1019 = vperm.slane %v991, 2
      %v1020 = vmul.f32 %v1018, %v992
      %v1021 = vmul.f32 %v1019, %v993
      %v1024 = vrot.slane %v1020, 4
      %v1025 = vrot.slane %v1021, 4
      %v1028 = vadd.f32 %v969, %v1024
      %v1029 = vadd.f32 %v970, %v1025
      %v1030 = vld [vmem:[%s255] sm:$0x77]
      %v1031 = vld [vmem:[%s266] sm:$0x7]
      %1033 = vst [vmem:[#allocation1] ss:$2 sm:$0xff] %v1030
      %v1034 = vld.sshfl [vmem:[#allocation1] sm:$0xff pattern:$0x75316420]
      %v1035 = vld.sshfl [vmem:[#allocation1 + $0x8] sm:$0xff pattern:$0x75316420]
      %1036 = vrot.lane.b32.xlu0 %v1034, 62
      %v1037 = vpop.permute.xlu0 %1036
      %1038 = vrot.lane.b32.xlu0 %v1035, 62
      %v1039 = vpop.permute.xlu0 %1038
      %vm1040 = vcmask 506880
      %v1041 = vsel %vm1040, %v1037, %v1039
      %1045 = vst [vmem:[#allocation1] ss:$2 sm:$0xff] %v1031
      %v1046 = vld.sshfl [vmem:[#allocation1] sm:$0xff pattern:$0x75316420]
      %1047 = vrot.lane.b32.xlu0 %v1046, 62
      %v1048 = vpop.permute.xlu0 %1047
      %v1050 = vsel %vm1040, %v1039, %v1048
      %v1051 = vld [vmem:[%s277 + $0xb0] sm:$0xf]
      %v1052 = vld [vmem:[%s277 + $0xb8] sm:$0xf]
      %v1053 = vperm.slane %v1041, 0
      %v1054 = vperm.slane %v1050, 0
      %v1055 = vmul.f32 %v1053, %v1051
      %v1056 = vmul.f32 %v1054, %v1052
      %v1057 = vadd.f32 %v1004, %v1055
      %v1058 = vadd.f32 %v1005, %v1056
      %v1059 = vperm.slane %v1041, 1
      %v1060 = vperm.slane %v1050, 1
      %v1061 = vmul.f32 %v1059, %v1051
      %v1062 = vmul.f32 %v1060, %v1052
      %v1063 = vadd.f32 %v1016, %v1061
      %v1064 = vadd.f32 %v1017, %v1062
      %v1065 = vperm.slane %v1041, 2
      %v1066 = vperm.slane %v1050, 2
      %v1067 = vmul.f32 %v1065, %v1051
      %v1068 = vmul.f32 %v1066, %v1052
      %v1069 = vadd.f32 %v1028, %v1067
      %v1070 = vadd.f32 %v1029, %v1068
      %vm1071 = vcmp.lt.s32.totalorder %v318, 15
      %vm1072 = vcmp.lt.s32.totalorder %v319, 15
      %v1073 = vld [vmem:[%s255] sm:$0x77]
      %v1074 = vld [vmem:[%s266] sm:$0x7]
      %1076 = vst [vmem:[#allocation1] ss:$2 sm:$0xff] %v1073
      %v1077 = vld.sshfl [vmem:[#allocation1] sm:$0xff pattern:$0x75316420]
      %v1078 = vld.sshfl [vmem:[#allocation1 + $0x8] sm:$0xff pattern:$0x75316420]
      %1079 = vrot.lane.b32.xlu0 %v1077, 125
      %v1080 = vpop.permute.xlu0 %1079
      %1081 = vrot.lane.b32.xlu0 %v1078, 125
      %v1082 = vpop.permute.xlu0 %1081
      %vm1083 = vcmask 1022976
      %v1084 = vsel %vm1083, %v1080, %v1082
      %1088 = vst [vmem:[#allocation1] ss:$2 sm:$0xff] %v1074
      %v1089 = vld.sshfl [vmem:[#allocation1] sm:$0xff pattern:$0x75316420]
      %1090 = vrot.lane.b32.xlu0 %v1089, 125
      %v1091 = vpop.permute.xlu0 %1090
      %v1093 = vsel %vm1083, %v1082, %v1091
      %v1094 = vsel %vm1071, %v1084, 0.0
      %v1095 = vsel %vm1072, %v1093, 0.0
      %v1096 = vld [vmem:[%s277 + $0x10] sm:$0xf0]
      %v1097 = vld [vmem:[%s277 + $0x18] sm:$0xf0]
      %v1098 = vperm.slane %v1094, 0
      %v1099 = vperm.slane %v1095, 0
      %v1100 = vmul.f32 %v1098, %v1096
      %v1101 = vmul.f32 %v1099, %v1097
      %v1104 = vrot.slane %v1100, 4
      %v1105 = vrot.slane %v1101, 4
      %v1108 = vadd.f32 %v1057, %v1104
      %v1109 = vadd.f32 %v1058, %v1105
      %v1110 = vperm.slane %v1094, 1
      %v1111 = vperm.slane %v1095, 1
      %v1112 = vmul.f32 %v1110, %v1096
      %v1113 = vmul.f32 %v1111, %v1097
      %v1116 = vrot.slane %v1112, 4
      %v1117 = vrot.slane %v1113, 4
      %v1120 = vadd.f32 %v1063, %v1116
      %v1121 = vadd.f32 %v1064, %v1117
      %v1122 = vperm.slane %v1094, 2
      %v1123 = vperm.slane %v1095, 2
      %v1124 = vmul.f32 %v1122, %v1096
      %v1125 = vmul.f32 %v1123, %v1097
      %v1128 = vrot.slane %v1124, 4
      %v1129 = vrot.slane %v1125, 4
      %v1132 = vadd.f32 %v1069, %v1128
      %v1133 = vadd.f32 %v1070, %v1129
      %v1134 = vld [vmem:[%s255] sm:$0x77]
      %v1135 = vld [vmem:[%s266] sm:$0x7]
      %1137 = vst [vmem:[#allocation1] ss:$2 sm:$0xff] %v1134
      %v1138 = vld.sshfl [vmem:[#allocation1] sm:$0xff pattern:$0x75316420]
      %v1139 = vld.sshfl [vmem:[#allocation1 + $0x8] sm:$0xff pattern:$0x75316420]
      %1140 = vrot.lane.b32.xlu0 %v1138, 109
      %v1141 = vpop.permute.xlu0 %1140
      %1142 = vrot.lane.b32.xlu0 %v1139, 109
      %v1143 = vpop.permute.xlu0 %1142
      %vm1144 = vcmask 891904
      %v1145 = vsel %vm1144, %v1141, %v1143
      %1149 = vst [vmem:[#allocation1] ss:$2 sm:$0xff] %v1135
      %v1150 = vld.sshfl [vmem:[#allocation1] sm:$0xff pattern:$0x75316420]
      %1151 = vrot.lane.b32.xlu0 %v1150, 109
      %v1152 = vpop.permute.xlu0 %1151
      %v1154 = vsel %vm1144, %v1143, %v1152
      %v1155 = vsel %vm1071, %v1145, 0.0
      %v1156 = vsel %vm1072, %v1154, 0.0
      %v1157 = vld [vmem:[%s277 + $0x40] sm:$0xf]
      %v1158 = vld [vmem:[%s277 + $0x48] sm:$0xf]
      %v1159 = vperm.slane %v1155, 0
      %v1160 = vperm.slane %v1156, 0
      %v1161 = vmul.f32 %v1159, %v1157
      %v1162 = vmul.f32 %v1160, %v1158
      %v1163 = vadd.f32 %v1108, %v1161
      %v1164 = vadd.f32 %v1109, %v1162
      %v1165 = vperm.slane %v1155, 1
      %v1166 = vperm.slane %v1156, 1
      %v1167 = vmul.f32 %v1165, %v1157
      %v1168 = vmul.f32 %v1166, %v1158
      %v1169 = vadd.f32 %v1120, %v1167
      %v1170 = vadd.f32 %v1121, %v1168
      %v1171 = vperm.slane %v1155, 2
      %v1172 = vperm.slane %v1156, 2
      %v1173 = vmul.f32 %v1171, %v1157
      %v1174 = vmul.f32 %v1172, %v1158
      %v1175 = vadd.f32 %v1132, %v1173
      %v1176 = vadd.f32 %v1133, %v1174
      %v1177 = vld [vmem:[%s255] sm:$0x77]
      %v1178 = vld [vmem:[%s266] sm:$0x7]
      %1180 = vst [vmem:[#allocation1] ss:$2 sm:$0xff] %v1177
      %v1181 = vld.sshfl [vmem:[#allocation1] sm:$0xff pattern:$0x75316420]
      %v1182 = vld.sshfl [vmem:[#allocation1 + $0x8] sm:$0xff pattern:$0x75316420]
      %1183 = vrot.lane.b32.xlu0 %v1181, 93
      %v1184 = vpop.permute.xlu0 %1183
      %1185 = vrot.lane.b32.xlu0 %v1182, 93
      %v1186 = vpop.permute.xlu0 %1185
      %vm1187 = vcmask 760832
      %v1188 = vsel %vm1187, %v1184, %v1186
      %1192 = vst [vmem:[#allocation1] ss:$2 sm:$0xff] %v1178
      %v1193 = vld.sshfl [vmem:[#allocation1] sm:$0xff pattern:$0x75316420]
      %1194 = vrot.lane.b32.xlu0 %v1193, 93
      %v1195 = vpop.permute.xlu0 %1194
      %v1197 = vsel %vm1187, %v1186, %v1195
      %v1198 = vsel %vm1071, %v1188, 0.0
      %v1199 = vsel %vm1072, %v1197, 0.0
      %v1200 = vld [vmem:[%s277 + $0x60] sm:$0xf0]
      %v1201 = vld [vmem:[%s277 + $0x68] sm:$0xf0]
      %v1202 = vperm.slane %v1198, 0
      %v1203 = vperm.slane %v1199, 0
      %v1204 = vmul.f32 %v1202, %v1200
      %v1205 = vmul.f32 %v1203, %v1201
      %v1208 = vrot.slane %v1204, 4
      %v1209 = vrot.slane %v1205, 4
      %v1212 = vadd.f32 %v1163, %v1208
      %v1213 = vadd.f32 %v1164, %v1209
      %v1214 = vperm.slane %v1198, 1
      %v1215 = vperm.slane %v1199, 1
      %v1216 = vmul.f32 %v1214, %v1200
      %v1217 = vmul.f32 %v1215, %v1201
      %v1220 = vrot.slane %v1216, 4
      %v1221 = vrot.slane %v1217, 4
      %v1224 = vadd.f32 %v1169, %v1220
      %v1225 = vadd.f32 %v1170, %v1221
      %v1226 = vperm.slane %v1198, 2
      %v1227 = vperm.slane %v1199, 2
      %v1228 = vmul.f32 %v1226, %v1200
      %v1229 = vmul.f32 %v1227, %v1201
      %v1232 = vrot.slane %v1228, 4
      %v1233 = vrot.slane %v1229, 4
      %v1236 = vadd.f32 %v1175, %v1232
      %v1237 = vadd.f32 %v1176, %v1233
      %v1238 = vld [vmem:[%s255] sm:$0x77]
      %v1239 = vld [vmem:[%s266] sm:$0x7]
      %1241 = vst [vmem:[#allocation1] ss:$2 sm:$0xff] %v1238
      %v1242 = vld.sshfl [vmem:[#allocation1] sm:$0xff pattern:$0x75316420]
      %v1243 = vld.sshfl [vmem:[#allocation1 + $0x8] sm:$0xff pattern:$0x75316420]
      %1244 = vrot.lane.b32.xlu0 %v1242, 77
      %v1245 = vpop.permute.xlu0 %1244
      %1246 = vrot.lane.b32.xlu0 %v1243, 77
      %v1247 = vpop.permute.xlu0 %1246
      %vm1248 = vcmask 629760
      %v1249 = vsel %vm1248, %v1245, %v1247
      %1253 = vst [vmem:[#allocation1] ss:$2 sm:$0xff] %v1239
      %v1254 = vld.sshfl [vmem:[#allocation1] sm:$0xff pattern:$0x75316420]
      %1255 = vrot.lane.b32.xlu0 %v1254, 77
      %v1256 = vpop.permute.xlu0 %1255
      %v1258 = vsel %vm1248, %v1247, %v1256
      %v1259 = vsel %vm1071, %v1249, 0.0
      %v1260 = vsel %vm1072, %v1258, 0.0
      %v1261 = vld [vmem:[%s277 + $0x90] sm:$0xf]
      %v1262 = vld [vmem:[%s277 + $0x98] sm:$0xf]
      %v1263 = vperm.slane %v1259, 0
      %v1264 = vperm.slane %v1260, 0
      %v1265 = vmul.f32 %v1263, %v1261
      %v1266 = vmul.f32 %v1264, %v1262
      %v1267 = vadd.f32 %v1212, %v1265
      %v1268 = vadd.f32 %v1213, %v1266
      %v1269 = vperm.slane %v1259, 1
      %v1270 = vperm.slane %v1260, 1
      %v1271 = vmul.f32 %v1269, %v1261
      %v1272 = vmul.f32 %v1270, %v1262
      %v1273 = vadd.f32 %v1224, %v1271
      %v1274 = vadd.f32 %v1225, %v1272
      %v1275 = vperm.slane %v1259, 2
      %v1276 = vperm.slane %v1260, 2
      %v1277 = vmul.f32 %v1275, %v1261
      %v1278 = vmul.f32 %v1276, %v1262
      %v1279 = vadd.f32 %v1236, %v1277
      %v1280 = vadd.f32 %v1237, %v1278
      %v1281 = vld [vmem:[%s255] sm:$0x77]
      %v1282 = vld [vmem:[%s266] sm:$0x7]
      %1284 = vst [vmem:[#allocation1] ss:$2 sm:$0xff] %v1281
      %v1285 = vld.sshfl [vmem:[#allocation1] sm:$0xff pattern:$0x75316420]
      %v1286 = vld.sshfl [vmem:[#allocation1 + $0x8] sm:$0xff pattern:$0x75316420]
      %1287 = vrot.lane.b32.xlu0 %v1285, 61
      %v1288 = vpop.permute.xlu0 %1287
      %1289 = vrot.lane.b32.xlu0 %v1286, 61
      %v1290 = vpop.permute.xlu0 %1289
      %vm1291 = vcmask 498688
      %v1292 = vsel %vm1291, %v1288, %v1290
      %1296 = vst [vmem:[#allocation1] ss:$2 sm:$0xff] %v1282
      %v1297 = vld.sshfl [vmem:[#allocation1] sm:$0xff pattern:$0x75316420]
      %1298 = vrot.lane.b32.xlu0 %v1297, 61
      %v1299 = vpop.permute.xlu0 %1298
      %v1301 = vsel %vm1291, %v1290, %v1299
      %v1302 = vsel %vm1071, %v1292, 0.0
      %v1303 = vsel %vm1072, %v1301, 0.0
      %v1304 = vld [vmem:[%s277 + $0xb0] sm:$0xf0]
      %v1305 = vld [vmem:[%s277 + $0xb8] sm:$0xf0]
      %v1306 = vperm.slane %v1302, 0
      %v1307 = vperm.slane %v1303, 0
      %v1308 = vmul.f32 %v1306, %v1304
      %v1309 = vmul.f32 %v1307, %v1305
      %v1312 = vrot.slane %v1308, 4
      %v1313 = vrot.slane %v1309, 4
      %v1316 = vadd.f32 %v1267, %v1312
      %v1317 = vadd.f32 %v1268, %v1313
      %v1318 = vperm.slane %v1302, 1
      %v1319 = vperm.slane %v1303, 1
      %v1320 = vmul.f32 %v1318, %v1304
      %v1321 = vmul.f32 %v1319, %v1305
      %v1324 = vrot.slane %v1320, 4
      %v1325 = vrot.slane %v1321, 4
      %v1328 = vadd.f32 %v1273, %v1324
      %v1329 = vadd.f32 %v1274, %v1325
      %v1330 = vperm.slane %v1302, 2
      %v1331 = vperm.slane %v1303, 2
      %v1332 = vmul.f32 %v1330, %v1304
      %v1333 = vmul.f32 %v1331, %v1305
      %v1336 = vrot.slane %v1332, 4
      %v1337 = vrot.slane %v1333, 4
      %v1340 = vadd.f32 %v1279, %v1336
      %v1341 = vadd.f32 %v1280, %v1337
      %vm1342 = vcmp.lt.s32.totalorder %v318, 14
      %vm1343 = vcmp.lt.s32.totalorder %v319, 14
      %v1344 = vld [vmem:[%s255] sm:$0x77]
      %v1345 = vld [vmem:[%s266] sm:$0x7]
      %1347 = vst [vmem:[#allocation1] ss:$2 sm:$0xff] %v1344
      %v1348 = vld.sshfl [vmem:[#allocation1] sm:$0xff pattern:$0x75316420]
      %v1349 = vld.sshfl [vmem:[#allocation1 + $0x8] sm:$0xff pattern:$0x75316420]
      %1350 = vrot.lane.b32.xlu0 %v1348, 124
      %v1351 = vpop.permute.xlu0 %1350
      %1352 = vrot.lane.b32.xlu0 %v1349, 124
      %v1353 = vpop.permute.xlu0 %1352
      %vm1354 = vcmask 1014784
      %v1355 = vsel %vm1354, %v1351, %v1353
      %1359 = vst [vmem:[#allocation1] ss:$2 sm:$0xff] %v1345
      %v1360 = vld.sshfl [vmem:[#allocation1] sm:$0xff pattern:$0x75316420]
      %1361 = vrot.lane.b32.xlu0 %v1360, 124
      %v1362 = vpop.permute.xlu0 %1361
      %v1364 = vsel %vm1354, %v1353, %v1362
      %v1365 = vsel %vm1342, %v1355, 0.0
      %v1366 = vsel %vm1343, %v1364, 0.0
      %v1367 = vld [vmem:[%s277 + $0x20] sm:$0xf]
      %v1368 = vld [vmem:[%s277 + $0x28] sm:$0xf]
      %v1369 = vperm.slane %v1365, 0
      %v1370 = vperm.slane %v1366, 0
      %v1371 = vmul.f32 %v1369, %v1367
      %v1372 = vmul.f32 %v1370, %v1368
      %v1373 = vadd.f32 %v1316, %v1371
      %v1374 = vadd.f32 %v1317, %v1372
      %v1375 = vperm.slane %v1365, 1
      %v1376 = vperm.slane %v1366, 1
      %v1377 = vmul.f32 %v1375, %v1367
      %v1378 = vmul.f32 %v1376, %v1368
      %v1379 = vadd.f32 %v1328, %v1377
      %v1380 = vadd.f32 %v1329, %v1378
      %v1381 = vperm.slane %v1365, 2
      %v1382 = vperm.slane %v1366, 2
      %v1383 = vmul.f32 %v1381, %v1367
      %v1384 = vmul.f32 %v1382, %v1368
      %v1385 = vadd.f32 %v1340, %v1383
      %v1386 = vadd.f32 %v1341, %v1384
      %v1387 = vld [vmem:[%s255] sm:$0x77]
      %v1388 = vld [vmem:[%s266] sm:$0x7]
      %1390 = vst [vmem:[#allocation1] ss:$2 sm:$0xff] %v1387
      %v1391 = vld.sshfl [vmem:[#allocation1] sm:$0xff pattern:$0x75316420]
      %v1392 = vld.sshfl [vmem:[#allocation1 + $0x8] sm:$0xff pattern:$0x75316420]
      %1393 = vrot.lane.b32.xlu0 %v1391, 108
      %v1394 = vpop.permute.xlu0 %1393
      %1395 = vrot.lane.b32.xlu0 %v1392, 108
      %v1396 = vpop.permute.xlu0 %1395
      %vm1397 = vcmask 883712
      %v1398 = vsel %vm1397, %v1394, %v1396
      %1402 = vst [vmem:[#allocation1] ss:$2 sm:$0xff] %v1388
      %v1403 = vld.sshfl [vmem:[#allocation1] sm:$0xff pattern:$0x75316420]
      %1404 = vrot.lane.b32.xlu0 %v1403, 108
      %v1405 = vpop.permute.xlu0 %1404
      %v1407 = vsel %vm1397, %v1396, %v1405
      %v1408 = vsel %vm1342, %v1398, 0.0
      %v1409 = vsel %vm1343, %v1407, 0.0
      %v1410 = vld [vmem:[%s277 + $0x40] sm:$0xf0]
      %v1411 = vld [vmem:[%s277 + $0x48] sm:$0xf0]
      %v1412 = vperm.slane %v1408, 0
      %v1413 = vperm.slane %v1409, 0
      %v1414 = vmul.f32 %v1412, %v1410
      %v1415 = vmul.f32 %v1413, %v1411
      %v1418 = vrot.slane %v1414, 4
      %v1419 = vrot.slane %v1415, 4
      %v1422 = vadd.f32 %v1373, %v1418
      %v1423 = vadd.f32 %v1374, %v1419
      %v1424 = vperm.slane %v1408, 1
      %v1425 = vperm.slane %v1409, 1
      %v1426 = vmul.f32 %v1424, %v1410
      %v1427 = vmul.f32 %v1425, %v1411
      %v1430 = vrot.slane %v1426, 4
      %v1431 = vrot.slane %v1427, 4
      %v1434 = vadd.f32 %v1379, %v1430
      %v1435 = vadd.f32 %v1380, %v1431
      %v1436 = vperm.slane %v1408, 2
      %v1437 = vperm.slane %v1409, 2
      %v1438 = vmul.f32 %v1436, %v1410
      %v1439 = vmul.f32 %v1437, %v1411
      %v1442 = vrot.slane %v1438, 4
      %v1443 = vrot.slane %v1439, 4
      %v1446 = vadd.f32 %v1385, %v1442
      %v1447 = vadd.f32 %v1386, %v1443
      %v1448 = vld [vmem:[%s255] sm:$0x77]
      %v1449 = vld [vmem:[%s266] sm:$0x7]
      %1451 = vst [vmem:[#allocation1] ss:$2 sm:$0xff] %v1448
      %v1452 = vld.sshfl [vmem:[#allocation1] sm:$0xff pattern:$0x75316420]
      %v1453 = vld.sshfl [vmem:[#allocation1 + $0x8] sm:$0xff pattern:$0x75316420]
      %1454 = vrot.lane.b32.xlu0 %v1452, 92
      %v1455 = vpop.permute.xlu0 %1454
      %1456 = vrot.lane.b32.xlu0 %v1453, 92
      %v1457 = vpop.permute.xlu0 %1456
      %vm1458 = vcmask 752640
      %v1459 = vsel %vm1458, %v1455, %v1457
      %1463 = vst [vmem:[#allocation1] ss:$2 sm:$0xff] %v1449
      %v1464 = vld.sshfl [vmem:[#allocation1] sm:$0xff pattern:$0x75316420]
      %1465 = vrot.lane.b32.xlu0 %v1464, 92
      %v1466 = vpop.permute.xlu0 %1465
      %v1468 = vsel %vm1458, %v1457, %v1466
      %v1469 = vsel %vm1342, %v1459, 0.0
      %v1470 = vsel %vm1343, %v1468, 0.0
      %v1471 = vld [vmem:[%s277 + $0x70] sm:$0xf]
      %v1472 = vld [vmem:[%s277 + $0x78] sm:$0xf]
      %v1473 = vperm.slane %v1469, 0
      %v1474 = vperm.slane %v1470, 0
      %v1475 = vmul.f32 %v1473, %v1471
      %v1476 = vmul.f32 %v1474, %v1472
      %v1477 = vadd.f32 %v1422, %v1475
      %v1478 = vadd.f32 %v1423, %v1476
      %v1479 = vperm.slane %v1469, 1
      %v1480 = vperm.slane %v1470, 1
      %v1481 = vmul.f32 %v1479, %v1471
      %v1482 = vmul.f32 %v1480, %v1472
      %v1483 = vadd.f32 %v1434, %v1481
      %v1484 = vadd.f32 %v1435, %v1482
      %v1485 = vperm.slane %v1469, 2
      %v1486 = vperm.slane %v1470, 2
      %v1487 = vmul.f32 %v1485, %v1471
      %v1488 = vmul.f32 %v1486, %v1472
      %v1489 = vadd.f32 %v1446, %v1487
      %v1490 = vadd.f32 %v1447, %v1488
      %v1491 = vld [vmem:[%s255] sm:$0x77]
      %v1492 = vld [vmem:[%s266] sm:$0x7]
      %1494 = vst [vmem:[#allocation1] ss:$2 sm:$0xff] %v1491
      %v1495 = vld.sshfl [vmem:[#allocation1] sm:$0xff pattern:$0x75316420]
      %v1496 = vld.sshfl [vmem:[#allocation1 + $0x8] sm:$0xff pattern:$0x75316420]
      %1497 = vrot.lane.b32.xlu0 %v1495, 76
      %v1498 = vpop.permute.xlu0 %1497
      %1499 = vrot.lane.b32.xlu0 %v1496, 76
      %v1500 = vpop.permute.xlu0 %1499
      %vm1501 = vcmask 621568
      %v1502 = vsel %vm1501, %v1498, %v1500
      %1506 = vst [vmem:[#allocation1] ss:$2 sm:$0xff] %v1492
      %v1507 = vld.sshfl [vmem:[#allocation1] sm:$0xff pattern:$0x75316420]
      %1508 = vrot.lane.b32.xlu0 %v1507, 76
      %v1509 = vpop.permute.xlu0 %1508
      %v1511 = vsel %vm1501, %v1500, %v1509
      %v1512 = vsel %vm1342, %v1502, 0.0
      %v1513 = vsel %vm1343, %v1511, 0.0
      %v1514 = vld [vmem:[%s277 + $0x90] sm:$0xf0]
      %v1515 = vld [vmem:[%s277 + $0x98] sm:$0xf0]
      %v1516 = vperm.slane %v1512, 0
      %v1517 = vperm.slane %v1513, 0
      %v1518 = vmul.f32 %v1516, %v1514
      %v1519 = vmul.f32 %v1517, %v1515
      %v1522 = vrot.slane %v1518, 4
      %v1523 = vrot.slane %v1519, 4
      %v1526 = vadd.f32 %v1477, %v1522
      %v1527 = vadd.f32 %v1478, %v1523
      %v1528 = vperm.slane %v1512, 1
      %v1529 = vperm.slane %v1513, 1
      %v1530 = vmul.f32 %v1528, %v1514
      %v1531 = vmul.f32 %v1529, %v1515
      %v1534 = vrot.slane %v1530, 4
      %v1535 = vrot.slane %v1531, 4
      %v1538 = vadd.f32 %v1483, %v1534
      %v1539 = vadd.f32 %v1484, %v1535
      %v1540 = vperm.slane %v1512, 2
      %v1541 = vperm.slane %v1513, 2
      %v1542 = vmul.f32 %v1540, %v1514
      %v1543 = vmul.f32 %v1541, %v1515
      %v1546 = vrot.slane %v1542, 4
      %v1547 = vrot.slane %v1543, 4
      %v1550 = vadd.f32 %v1489, %v1546
      %v1551 = vadd.f32 %v1490, %v1547
      %v1552 = vld [vmem:[%s255] sm:$0x77]
      %v1553 = vld [vmem:[%s266] sm:$0x7]
      %1555 = vst [vmem:[#allocation1] ss:$2 sm:$0xff] %v1552
      %v1556 = vld.sshfl [vmem:[#allocation1] sm:$0xff pattern:$0x75316420]
      %v1557 = vld.sshfl [vmem:[#allocation1 + $0x8] sm:$0xff pattern:$0x75316420]
      %1558 = vrot.lane.b32.xlu0 %v1556, 60
      %v1559 = vpop.permute.xlu0 %1558
      %1560 = vrot.lane.b32.xlu0 %v1557, 60
      %v1561 = vpop.permute.xlu0 %1560
      %vm1562 = vcmask 490496
      %v1563 = vsel %vm1562, %v1559, %v1561
      %1567 = vst [vmem:[#allocation1] ss:$2 sm:$0xff] %v1553
      %v1568 = vld.sshfl [vmem:[#allocation1] sm:$0xff pattern:$0x75316420]
      %1569 = vrot.lane.b32.xlu0 %v1568, 60
      %v1570 = vpop.permute.xlu0 %1569
      %v1572 = vsel %vm1562, %v1561, %v1570
      %v1573 = vsel %vm1342, %v1563, 0.0
      %v1574 = vsel %vm1343, %v1572, 0.0
      %v1575 = vld [vmem:[%s277 + $0xc0] sm:$0xf]
      %v1576 = vld [vmem:[%s277 + $0xc8] sm:$0xf]
      %v1577 = vperm.slane %v1573, 0
      %v1578 = vperm.slane %v1574, 0
      %v1579 = vmul.f32 %v1577, %v1575
      %v1580 = vmul.f32 %v1578, %v1576
      %v1581 = vadd.f32 %v1526, %v1579
      %v1582 = vadd.f32 %v1527, %v1580
      %v1583 = vperm.slane %v1573, 1
      %v1584 = vperm.slane %v1574, 1
      %v1585 = vmul.f32 %v1583, %v1575
      %v1586 = vmul.f32 %v1584, %v1576
      %v1587 = vadd.f32 %v1538, %v1585
      %v1588 = vadd.f32 %v1539, %v1586
      %v1589 = vperm.slane %v1573, 2
      %v1590 = vperm.slane %v1574, 2
      %v1591 = vmul.f32 %v1589, %v1575
      %v1592 = vmul.f32 %v1590, %v1576
      %v1593 = vadd.f32 %v1550, %v1591
      %v1594 = vadd.f32 %v1551, %v1592
      %v1597 = vrot.slane %v1587, 4
      %v1598 = vrot.slane %v1588, 4
      %vm1601 = vcmask 1043456
      %v1602 = vsel %vm1601, %v1581, %v1597
      %v1603 = vsel %vm1601, %v1582, %v1598
      %1604 = vst [vmem:[%s287] sm:$0xff] %v1602
      %1605 = vst [vmem:[%s287 + $0x8] sm:$0xff] %v1603
      %1606 = vst [vmem:[%s287 + $0x10] sm:$0xf] %v1593
      %1607 = vst [vmem:[%s287 + $0x18] sm:$0xf] %v1594
      %s1608 = smul.u32 2, %s19
      %p1609 = scmp.lt.s32.totalorder %s18, 1
      %s1610 = scalar_select %p1609, %s18, 1
      %p1611 = scmp.lt.s32.totalorder %s1608, 1
      %s1612 = scalar_select %p1611, %s1608, 1
      %s1613 = smul.addr %s1610, 4
      %s1614 = sadd.s32 %s1612, %s1613
      %s1615 = smul.addr %s1614, 8
      %s1616 = scalar_lea.vmem %s3, %s1615
      // Predicated region
      $region33: #{_lambda_.1} parent=31 // pred_check
        %p1617 = pneg %p132
      $region34: #{_lambda_.1} parent=31 // pred_check_branch
        %1619 = sbr.rel (%p1617) target = $region36
      $region35: #{_lambda_.1} parent=31 // pred_region
        %s1620 = smul.u32 2, %s19
      $region36: #{_lambda_.1} parent=31 // pred_fallthru
        _
    $region32: #{_lambda_.1} parent=5 // pred_fallthru
      _
    %p1621 = scmp.le.s32.totalorder 2, %s9
    // Predicated region
    $region37: #{_lambda_.1} parent=5 // pred_check
      %p1622 = pneg %p1621
    $region38: #{_lambda_.1} parent=5 // pred_check_branch
      %1624 = sbr.rel (%p1622) target = $region40
    $region39: #{_lambda_.1} parent=5 // pred_region
      %s1625 = ssub.s32 %s9, 2
      // Predicated region
      $region41: #{_lambda_.1} parent=39 // pred_check
        %p1626 = pneg %p138
      $region42: #{_lambda_.1} parent=39 // pred_check_branch
        %1628 = sbr.rel (%p1626) target = $region44
      $region43: #{_lambda_.1} parent=39 // pred_region
        %s1629 = smul.u32 2, %s21
        %p1630 = scmp.lt.s32.totalorder %s20, 1
        %s1631 = scalar_select %p1630, %s20, 1
        %p1632 = scmp.lt.s32.totalorder %s1629, 1
        %s1633 = scalar_select %p1632, %s1629, 1
        %s1634 = smul.addr %s1631, 4
        %s1635 = sadd.s32 %s1633, %s1634
        %s1636 = smul.addr %s1635, 8
        %s1637 = scalar_lea.vmem %s3, %s1636
      $region44: #{_lambda_.1} parent=39 // pred_fallthru
        _
    $region40: #{_lambda_.1} parent=5 // pred_fallthru
      _
  $region6: #{_lambda_.1} parent=0 // loop_footer
    %s13 = sadd.s32 1, %s9
  $region7: #{_lambda_.1} parent=0 // loop_footer_branch
    %8 = sbr.rel target = $region3
  $region8: #{_lambda_.1} parent=0 // loop_exit
    _

</llo_original>
